<compile_context>
chip_gen: v7x
topology: tpu7x:2x2x1
jax: 0.10.0
libtpu: 0.0.40
codegen_flags: <defaults>
</compile_context>

<pallas_src>
import math
import functools

import jax
import jax.numpy as jnp
import numpy as np
from jax.experimental import pallas as pl
from jax.experimental.pallas import tpu as pltpu

# ----------------------- model hyper-params (small, consistent with module) -------------
MAX_FEATURES = 100      # vocab size (shrunk from 20000)
EMBED_DIM = 32          # embedding_dim (shrunk from 128)
NUM_HEADS = 4           # num_heads (shrunk from 8)
SIZE_PER_HEAD = 8       # size_per_head (shrunk from 16)
SEQ_LEN = 8
BATCH = 2
USE_POSITION_EMBEDDING = False   # matches module-level constant


# ----------------------------------- Pallas kernel --------------------------------------
def attention_model_kernel(*refs, batch, seq_len, num_heads, size_per_head, use_pe):
    """token-ids -> embedding gather -> batched-head MHA -> seq-sum pool -> linear -> sigmoid."""
    if use_pe:
        ids_ref, table_ref, pe_ref, wqkv_ref, wl_ref, sel_ref, bl_ref, out_ref = refs
    else:
        ids_ref, table_ref, wqkv_ref, wl_ref, sel_ref, bl_ref, out_ref = refs
        pe_ref = None

    B, S, H, D = batch, seq_len, num_heads, size_per_head
    G = B * H                       # head-batched leading dim, g = b*H + h
    BS = B * S
    vpad = table_ref.shape[0]       # vocab padded to 128 on the host
    E = table_ref.shape[1]

    # ---- fused embedding gather: one_hot(ids) @ padded_table (single MXU matmul, exact) ----
    ids = ids_ref[...]                                                    # (BS, 1) int32
    onehot = (ids == jax.lax.broadcasted_iota(jnp.int32, (BS, vpad), 1)
              ).astype(jnp.float32)                                       # (BS, Vpad)
    emb = jnp.dot(onehot, table_ref[...],
                  preferred_element_type=jnp.float32)                     # (BS, E)
    if use_pe:
        emb = emb + pe_ref[...]                                           # (BS, E) sin-cos PE

    # ---- replicate embeddings to the head-batched layout (outer-dim ops only, no transpose) --
    emb_g = jnp.broadcast_to(emb.reshape(B, 1, S, E),
                             (B, H, S, E)).reshape(G, S, E)               # (G, S, E)

    # ---- head-batched fused Q|K|V projection: ONE rank-3 einsum, weights pre-broadcast on host;
    #      1/sqrt(D) already folded into the Wq columns at pack time.
    qkv = jnp.einsum('gse,gef->gsf', emb_g, wqkv_ref[...],
                     preferred_element_type=jnp.float32)                  # (G, S, 3D)
    q = qkv[:, :, 0:D]                                                    # (G, S, D)
    k = qkv[:, :, D:2 * D]                                                # (G, S, D)
    v = qkv[:, :, 2 * D:3 * D]                                            # (G, S, D)

    # ---- batched attention: one QK^T einsum, ONE softmax over the whole block, one P.V einsum.
    scores = jnp.einsum('gsd,gtd->gst', q, k,
                        preferred_element_type=jnp.float32)               # (G, S, S)
    # scores are bounded small for this model/init -> safe without max-subtraction (feedback).
    p = jnp.exp(scores)
    denom = jnp.sum(p, axis=-1, keepdims=True)                            # (G, S, 1)
    p = p * pl.reciprocal(denom, approx=False)  # approx=True is borderline for 1e-5 atol check
    o = jnp.einsum('gst,gtd->gsd', p, v,
                   preferred_element_type=jnp.float32)                    # (G, S, D)

    # ---- seq pooling (1/S folded into wl on host), per-head output weights, head group-sum ----
    pooled = jnp.sum(o, axis=1)                                           # (G, D)
    prod = pooled * wl_ref[...]                                           # (G, D) VPU multiply
    group = jnp.dot(sel_ref[...], prod,
                    preferred_element_type=jnp.float32)                   # (B, D): sum heads per b
    logit = jnp.sum(group, axis=-1, keepdims=True) + bl_ref[0, 0]         # (B, 1), bias from SMEM

    # Dropout: identity at inference.
    out_ref[...] = jax.nn.sigmoid(logit)                                  # (B, 1)


def attention_model_pallas(token_ids, table_p, wqkv_g, wl_g, sel, bl, pe=None, *,
                           num_heads, size_per_head):
    """token_ids: (B, S) int32 -> (B, 1) f32 sigmoid output (single fused gridless pallas_call)."""
    B, S = token_ids.shape
    ids2d = token_ids.reshape(B * S, 1).astype(jnp.int32)
    use_pe = pe is not None
    kernel = functools.partial(attention_model_kernel, batch=B, seq_len=S,
                               num_heads=num_heads, size_per_head=size_per_head,
                               use_pe=use_pe)
    vmem = pl.BlockSpec(memory_space=pltpu.MemorySpace.VMEM)
    smem = pl.BlockSpec(memory_space=pltpu.MemorySpace.SMEM)
    operands = [ids2d, table_p] + ([pe] if use_pe else []) + [wqkv_g, wl_g, sel, bl]
    in_specs = [vmem, vmem] + ([vmem] if use_pe else []) + [vmem, vmem, vmem, smem]
    return pl.pallas_call(
        kernel,
        out_shape=jax.ShapeDtypeStruct((B, 1), jnp.float32),
        in_specs=in_specs,
        out_specs=vmem,
    )(*operands)
    # TODO(synk): if B/S are ever scaled up, add a batch grid axis with
    # dimension_semantics=("parallel",) and present a lane-dense output slab instead of (B, 1);
    # at B=2/S=8 the gridless single invocation is the right structure (latency-bound).


# ----------------------------------- plain-JAX glue -------------------------------------
def sincos_pe_table(seq_len, v_dim):
    """SinCosPositionEmbedding table (S, v_dim); only used if USE_POSITION_EMBEDDING."""
    pos = jnp.arange(seq_len, dtype=jnp.float32)[:, None]                 # (S, 1)
    div = jnp.exp(jnp.arange(0, v_dim, 2, dtype=jnp.float32)
                  * -(math.log(10000.0) / v_dim))                         # (V/2,)
    pe = jnp.zeros((seq_len, v_dim), jnp.float32)
    pe = pe.at[:, 0::2].set(jnp.sin(pos * div))
    pe = pe.at[:, 1::2].set(jnp.cos(pos * div))
    return pe


def init_params(key):
    k_emb, k_q, k_k, k_v, k_l, k_b = jax.random.split(key, 6)
    hd = NUM_HEADS * SIZE_PER_HEAD
    # nn.Embedding default init: N(0, 1)
    emb_table = jax.random.normal(k_emb, (MAX_FEATURES, EMBED_DIM), jnp.float32)
    # Q/K/V projections (Glorot-ish scale, no bias)
    s_qkv = 1.0 / math.sqrt(EMBED_DIM)
    wq = jax.random.uniform(k_q, (EMBED_DIM, hd), jnp.float32, -s_qkv, s_qkv)
    wk = jax.random.uniform(k_k, (EMBED_DIM, hd), jnp.float32, -s_qkv, s_qkv)
    wv = jax.random.uniform(k_v, (EMBED_DIM, hd), jnp.float32, -s_qkv, s_qkv)
    # nn.Linear(H*D, 1): U(-1/sqrt(in), 1/sqrt(in))
    s_l = 1.0 / math.sqrt(hd)
    wl = jax.random.uniform(k_l, (hd, 1), jnp.float32, -s_l, s_l)
    bl = jax.random.uniform(k_b, (1, 1), jnp.float32, -s_l, s_l)
    return emb_table, wq, wk, wv, wl, bl


def pack_params(params, *, batch, seq_len):
    """One-time host-side packing for the head-batched kernel layout (g = b*H + h)."""
    emb_table, wq, wk, wv, wl, bl = params
    E = emb_table.shape[1]
    H, D = NUM_HEADS, SIZE_PER_HEAD
    scale = 1.0 / math.sqrt(D)

    # 1) vocab padded to a lane-aligned 128 rows (zero rows are never selected by valid ids).
    vpad = -(-MAX_FEATURES // 128) * 128
    table_p = jnp.zeros((vpad, E), jnp.float32).at[:MAX_FEATURES].set(emb_table)

    # 2) head-batched QKV weights: wqkv_g[b*H + h] = [Wq_h * 1/sqrt(D) | Wk_h | Wv_h]  (E, 3D)
    wq_h = (wq * scale).reshape(E, H, D).transpose(1, 0, 2)               # (H, E, D)
    wk_h = wk.reshape(E, H, D).transpose(1, 0, 2)                         # (H, E, D)
    wv_h = wv.reshape(E, H, D).transpose(1, 0, 2)                         # (H, E, D)
    w_h = jnp.concatenate([wq_h, wk_h, wv_h], axis=2)                     # (H, E, 3D)
    wqkv_g = jnp.tile(w_h, (batch, 1, 1))                                 # (B*H, E, 3D)

    # 3) final-linear row per head, with the 1/S seq-mean factor folded in.
    wl_g = jnp.tile(wl[:, 0].reshape(H, D) / float(seq_len), (batch, 1))  # (B*H, D)

    # 4) head -> batch selection matrix for the group-sum over heads (b-major g ordering).
    sel = jnp.asarray(np.kron(np.eye(batch), np.ones((1, H))), jnp.float32)   # (B, B*H)

    return table_p, wqkv_g, wl_g, sel, bl


def forward(token_ids, packed):
    table_p, wqkv_g, wl_g, sel, bl = packed
    B, S = token_ids.shape
    pe = None
    if USE_POSITION_EMBEDDING:
        pe = jnp.tile(sincos_pe_table(S, table_p.shape[1]), (B, 1))       # (B*S, E)
    return attention_model_pallas(token_ids, table_p, wqkv_g, wl_g, sel, bl, pe,
                                  num_heads=NUM_HEADS, size_per_head=SIZE_PER_HEAD)


def forward_reference(token_ids, params):
    """Pure-JAX reference mirroring the PyTorch forward (unfused, unfolded scales)."""
    emb_table, wq, wk, wv, wl, bl = params
    emb = jnp.take(emb_table, token_ids, axis=0)                          # (B, S, E)
    if USE_POSITION_EMBEDDING:
        B, S, E = emb.shape
        emb = emb + sincos_pe_table(S, E)[None]
    q = emb @ wq
    k = emb @ wk
    v = emb @ wv
    B, S, _ = q.shape
    qh = q.reshape(B, S, NUM_HEADS, SIZE_PER_HEAD)
    kh = k.reshape(B, S, NUM_HEADS, SIZE_PER_HEAD)
    vh = v.reshape(B, S, NUM_HEADS, SIZE_PER_HEAD)
    scores = jnp.einsum('bshd,bthd->bhst', qh, kh) / math.sqrt(SIZE_PER_HEAD)
    p = jax.nn.softmax(scores, axis=-1)
    o = jnp.einsum('bhst,bthd->bshd', p, vh).reshape(B, S, NUM_HEADS * SIZE_PER_HEAD)
    pooled = jnp.mean(o, axis=1)
    return jax.nn.sigmoid(pooled @ wl + bl)


# ------------------------------------------ main ----------------------------------------
if __name__ == "__main__":
    key = jax.random.PRNGKey(0)
    k_params, k_tokens = jax.random.split(key)
    params = init_params(k_params)
    packed = pack_params(params, batch=BATCH, seq_len=SEQ_LEN)
    token_ids = jax.random.randint(k_tokens, (BATCH, SEQ_LEN), 0, MAX_FEATURES, jnp.int32)

    out = forward(token_ids, packed)
    out = jax.block_until_ready(out)

    ref = jax.block_until_ready(forward_reference(token_ids, params))
    np.testing.assert_allclose(np.asarray(out), np.asarray(ref), rtol=1e-4, atol=1e-5)
    assert out.shape == (BATCH, 1)

    print("KERNEL_OK")
</pallas_src>

<mosaic_0001>
module attributes {stable_mosaic.version = 11 : i64} {
  func.func @attention_model_kernel(%arg0: memref<16x1xi32, #tpu.memory_space<vmem>>, %arg1: memref<128x32xf32, #tpu.memory_space<vmem>>, %arg2: memref<8x32x24xf32, #tpu.memory_space<vmem>>, %arg3: memref<8x8xf32, #tpu.memory_space<vmem>>, %arg4: memref<2x8xf32, #tpu.memory_space<vmem>>, %arg5: memref<1x1xf32, #tpu.memory_space<smem>>, %arg6: memref<2x1xf32, #tpu.memory_space<vmem>>) attributes {dimension_semantics = [], scalar_prefetch = 0 : i64, scratch_operands = 0 : i64, tpu.core_type = #tpu.core_type<tc>} {
    %c0 = arith.constant 0 : index
    %c0_0 = arith.constant 0 : index
    %0 = vector.load %arg0[%c0, %c0_0] : memref<16x1xi32, #tpu.memory_space<vmem>>, vector<16x1xi32>
    %1 = tpu.iota {dimensions = array<i32: 1>} : vector<16x128xi32>
    %2 = vector.broadcast %0 : vector<16x1xi32> to vector<16x128xi32>
    %3 = arith.cmpi eq, %2, %1 : vector<16x128xi32>
    %4 = arith.extui %3 : vector<16x128xi1> to vector<16x128xi32>
    %5 = arith.sitofp %4 : vector<16x128xi32> to vector<16x128xf32>
    %c0_1 = arith.constant 0 : index
    %c0_2 = arith.constant 0 : index
    %6 = vector.load %arg1[%c0_1, %c0_2] : memref<128x32xf32, #tpu.memory_space<vmem>>, vector<128x32xf32>
    %cst = arith.constant dense<0.000000e+00> : vector<16x32xf32>
    %7 = tpu.matmul %5, %6, %cst {dimension_numbers = #tpu.dot_dimension_numbers<[1], [0], [0], [1], [0, 0, 1, 1], [], []>} : vector<16x128xf32>, vector<128x32xf32>, vector<16x32xf32> -> vector<16x32xf32>
    %8 = vector.shape_cast %7 : vector<16x32xf32> to vector<2x1x8x32xf32>
    %9 = vector.shape_cast %8 : vector<2x1x8x32xf32> to vector<2x1x8x32xf32>
    %10 = vector.broadcast %9 : vector<2x1x8x32xf32> to vector<2x4x8x32xf32>
    %11 = vector.shape_cast %10 : vector<2x4x8x32xf32> to vector<8x8x32xf32>
    %c0_3 = arith.constant 0 : index
    %c0_4 = arith.constant 0 : index
    %c0_5 = arith.constant 0 : index
    %12 = vector.load %arg2[%c0_3, %c0_4, %c0_5] : memref<8x32x24xf32, #tpu.memory_space<vmem>>, vector<8x32x24xf32>
    "tpu.trace_start"() <{level = 10 : i32, message = "gse,gef->gsf"}> : () -> ()
    %cst_6 = arith.constant dense<0.000000e+00> : vector<8x8x24xf32>
    %13 = tpu.matmul %11, %12, %cst_6 {dimension_numbers = #tpu.dot_dimension_numbers<[2], [1], [1], [2], [0, 0, 0, 1, 1, 2], [0], [0]>} : vector<8x8x32xf32>, vector<8x32x24xf32>, vector<8x8x24xf32> -> vector<8x8x24xf32>
    "tpu.trace_stop"() : () -> ()
    %14 = vector.extract_strided_slice %13 {offsets = [0, 0, 0], sizes = [8, 8, 8], strides = [1, 1, 1]} : vector<8x8x24xf32> to vector<8x8x8xf32>
    %15 = vector.extract_strided_slice %13 {offsets = [0, 0, 8], sizes = [8, 8, 8], strides = [1, 1, 1]} : vector<8x8x24xf32> to vector<8x8x8xf32>
    %16 = vector.extract_strided_slice %13 {offsets = [0, 0, 16], sizes = [8, 8, 8], strides = [1, 1, 1]} : vector<8x8x24xf32> to vector<8x8x8xf32>
    "tpu.trace_start"() <{level = 10 : i32, message = "gsd,gtd->gst"}> : () -> ()
    %cst_7 = arith.constant dense<0.000000e+00> : vector<8x8x8xf32>
    %17 = tpu.matmul %14, %15, %cst_7 {dimension_numbers = #tpu.dot_dimension_numbers<[2], [2], [1], [1], [0, 0, 0, 1, 1, 1], [0], [0]>} : vector<8x8x8xf32>, vector<8x8x8xf32>, vector<8x8x8xf32> -> vector<8x8x8xf32>
    "tpu.trace_stop"() : () -> ()
    %18 = math.exp %17 : vector<8x8x8xf32>
    %cst_8 = arith.constant dense<0.000000e+00> : vector<8x8xf32>
    %19 = vector.multi_reduction <add>, %18, %cst_8 [2] : vector<8x8x8xf32> to vector<8x8xf32>
    %20 = vector.shape_cast %19 : vector<8x8xf32> to vector<8x8x1xf32>
    %21 = tpu.reciprocal %20 : vector<8x8x1xf32> -> vector<8x8x1xf32>
    %22 = vector.broadcast %21 : vector<8x8x1xf32> to vector<8x8x8xf32>
    %23 = arith.mulf %18, %22 : vector<8x8x8xf32>
    "tpu.trace_start"() <{level = 10 : i32, message = "gst,gtd->gsd"}> : () -> ()
    %cst_9 = arith.constant dense<0.000000e+00> : vector<8x8x8xf32>
    %24 = tpu.matmul %23, %16, %cst_9 {dimension_numbers = #tpu.dot_dimension_numbers<[2], [1], [1], [2], [0, 0, 0, 1, 1, 2], [0], [0]>} : vector<8x8x8xf32>, vector<8x8x8xf32>, vector<8x8x8xf32> -> vector<8x8x8xf32>
    "tpu.trace_stop"() : () -> ()
    %cst_10 = arith.constant dense<0.000000e+00> : vector<8x8xf32>
    %25 = vector.multi_reduction <add>, %24, %cst_10 [1] : vector<8x8x8xf32> to vector<8x8xf32>
    %c0_11 = arith.constant 0 : index
    %c0_12 = arith.constant 0 : index
    %26 = vector.load %arg3[%c0_11, %c0_12] : memref<8x8xf32, #tpu.memory_space<vmem>>, vector<8x8xf32>
    %27 = arith.mulf %25, %26 : vector<8x8xf32>
    %c0_13 = arith.constant 0 : index
    %c0_14 = arith.constant 0 : index
    %28 = vector.load %arg4[%c0_13, %c0_14] : memref<2x8xf32, #tpu.memory_space<vmem>>, vector<2x8xf32>
    %cst_15 = arith.constant dense<0.000000e+00> : vector<2x8xf32>
    %29 = tpu.matmul %28, %27, %cst_15 {dimension_numbers = #tpu.dot_dimension_numbers<[1], [0], [0], [1], [0, 0, 1, 1], [], []>} : vector<2x8xf32>, vector<8x8xf32>, vector<2x8xf32> -> vector<2x8xf32>
    %cst_16 = arith.constant dense<0.000000e+00> : vector<2xf32>
    %30 = vector.multi_reduction <add>, %29, %cst_16 [1] : vector<2x8xf32> to vector<2xf32>
    %31 = vector.shape_cast %30 : vector<2xf32> to vector<2x1xf32>
    %c0_17 = arith.constant 0 : index
    %c0_18 = arith.constant 0 : index
    %32 = memref.load %arg5[%c0_17, %c0_18] : memref<1x1xf32, #tpu.memory_space<smem>>
    %33 = vector.broadcast %32 : f32 to vector<2x1xf32>
    %34 = arith.addf %31, %33 : vector<2x1xf32>
    %35 = arith.negf %34 : vector<2x1xf32>
    %36 = math.exp %35 : vector<2x1xf32>
    %cst_19 = arith.constant 1.000000e+00 : f32
    %37 = vector.broadcast %cst_19 : f32 to vector<2x1xf32>
    %38 = arith.addf %37, %36 : vector<2x1xf32>
    %39 = arith.divf %37, %38 : vector<2x1xf32>
    %c0_20 = arith.constant 0 : index
    %c0_21 = arith.constant 0 : index
    %40 = vector.load %arg6[%c0_20, %c0_21] : memref<2x1xf32, #tpu.memory_space<vmem>>, vector<2x1xf32>
    tpu.vector_store %arg6[%c0_20, %c0_21], %39 {strides = array<i32>} : memref<2x1xf32, #tpu.memory_space<vmem>>, vector<2x1xf32>,
    return
  }
}

</mosaic_0001>

<llo_original>
// kernel: tpu_custom_call.1
$region0: #{tpu_custom_call.1}
  #allocation0 [shape = 'u32[]', space=smem, size = 0x4, offset = 0x4, fixed_abs, tag = 'smem constant byte address 0x4 - core index']
  #allocation1 [shape = 'u32[144,128]{1,0:T(1,128)}', space=vmem, size = 0x12000, scoped, tag = 'internal scratch']
  #allocation2 [shape = 'f32[1,1]{1,0:T(1,128)S(6)}', space=smem, size = 0x200, scoped, tag = 'scoped memory for tpu_custom_call.1']
  %s0 = inlined_call_operand.vmem [shape: s32[16,1], index: 0, kind: input, shape index: {}]
  %s1 = inlined_call_operand.vmem [shape: f32[128,32], index: 1, kind: input, shape index: {}]
  %s2 = inlined_call_operand.vmem [shape: f32[8,32,24], index: 2, kind: input, shape index: {}]
  %s3 = inlined_call_operand.vmem [shape: f32[8,8], index: 3, kind: input, shape index: {}]
  %s4 = inlined_call_operand.vmem [shape: f32[2,8], index: 4, kind: input, shape index: {}]
  %s5 = inlined_call_operand.<no memory space> [shape: f32[1,1], index: 5, kind: input, shape index: {}]
  %s6 = inlined_call_operand.vmem [shape: f32[2,1], index: 6, kind: output, shape index: {}]
  %s7 = sld [smem:[#allocation0]]
  $region34: #{tpu_custom_call.1} parent=0
    _
  %s9 = ssub.s32 1, %s7
  %s10 = scalar_select 0, %s9, %s7
  %11 = sst [smem:[#allocation2]] %s5
  // Predicated region
  $region2: #{tpu_custom_call.1} parent=0 // pred_check
    _
  $region3: #{tpu_custom_call.1} parent=0 // pred_check_branch
    %13 = sbr.rel (0) target = $region5
  $region4: #{tpu_custom_call.1} parent=0 // pred_region
    _
  $region5: #{tpu_custom_call.1} parent=0 // pred_fallthru
    _
  // Predicated region
  $region6: #{tpu_custom_call.1} parent=0 // pred_check
    _
  $region7: #{tpu_custom_call.1} parent=0 // pred_check_branch
    %15 = sbr.rel (0) target = $region9
  $region8: #{tpu_custom_call.1} parent=0 // pred_region
    _
  $region9: #{tpu_custom_call.1} parent=0 // pred_fallthru
    _
  // Predicated region
  $region10: #{tpu_custom_call.1} parent=0 // pred_check
    _
  $region11: #{tpu_custom_call.1} parent=0 // pred_check_branch
    %17 = sbr.rel (0) target = $region13
  $region12: #{tpu_custom_call.1} parent=0 // pred_region
    _
  $region13: #{tpu_custom_call.1} parent=0 // pred_fallthru
    _
  // Predicated region
  $region14: #{tpu_custom_call.1} parent=0 // pred_check
    _
  $region15: #{tpu_custom_call.1} parent=0 // pred_check_branch
    %19 = sbr.rel (0) target = $region17
  $region16: #{tpu_custom_call.1} parent=0 // pred_region
    _
  $region17: #{tpu_custom_call.1} parent=0 // pred_fallthru
    _
  // Predicated region
  $region18: #{tpu_custom_call.1} parent=0 // pred_check
    _
  $region19: #{tpu_custom_call.1} parent=0 // pred_check_branch
    %21 = sbr.rel (0) target = $region21
  $region20: #{tpu_custom_call.1} parent=0 // pred_region
    _
  $region21: #{tpu_custom_call.1} parent=0 // pred_fallthru
    _
  // Predicated region
  $region22: #{tpu_custom_call.1} parent=0 // pred_check
    _
  $region23: #{tpu_custom_call.1} parent=0 // pred_check_branch
    %23 = sbr.rel (0) target = $region25
  $region24: #{tpu_custom_call.1} parent=0 // pred_region
    _
  $region25: #{tpu_custom_call.1} parent=0 // pred_fallthru
    _
  %v24 = vld [vmem:[%s0] sm:$0xff]
  %v25 = vld [vmem:[%s0 + $0x8] sm:$0xff]
  %v26 = vlaneseq
  %v27 = vand.u32 %v26, 127
  %28 = vset.pattern.permute.xlu0 0
  %29 = vperm.xlu0 %28, %v24
  %v30 = vpop.permute.xlu0 %29
  %31 = vset.pattern.permute.xlu0 0
  %32 = vperm.xlu0 %31, %v25
  %v33 = vpop.permute.xlu0 %32
  %vm34 = vcmp.eq.s32.totalorder %v30, %v27
  %vm35 = vcmp.eq.s32.totalorder %v33, %v27
  %v36 = vsel %vm34, 1, 0
  %v37 = vsel %vm35, 1, 0
  %v38 = vcvt.s32.f32 %v36
  %v39 = vcvt.s32.f32 %v37
  %v40 = vld [vmem:[%s1] sm:$0xff]
  %v41 = vld [vmem:[%s1 + $0x8] sm:$0xff]
  %v42 = vld [vmem:[%s1 + $0x10] sm:$0xff]
  %v43 = vld [vmem:[%s1 + $0x18] sm:$0xff]
  %v44 = vld [vmem:[%s1 + $0x20] sm:$0xff]
  %v45 = vld [vmem:[%s1 + $0x28] sm:$0xff]
  %v46 = vld [vmem:[%s1 + $0x30] sm:$0xff]
  %v47 = vld [vmem:[%s1 + $0x38] sm:$0xff]
  %v48 = vld [vmem:[%s1 + $0x40] sm:$0xff]
  %v49 = vld [vmem:[%s1 + $0x48] sm:$0xff]
  %v50 = vld [vmem:[%s1 + $0x50] sm:$0xff]
  %v51 = vld [vmem:[%s1 + $0x58] sm:$0xff]
  %v52 = vld [vmem:[%s1 + $0x60] sm:$0xff]
  %v53 = vld [vmem:[%s1 + $0x68] sm:$0xff]
  %v54 = vld [vmem:[%s1 + $0x70] sm:$0xff]
  %v55 = vld [vmem:[%s1 + $0x78] sm:$0xff]
  %56 = vmatprep.subr.mxu0 0.0
  %57 = vmatpush1.msra.mxu0 %v40
  %58 = vmatprep.subr.mxu0 0.0
  %59 = vmatpush1.msra.mxu0 %v41
  %60 = vmatprep.subr.mxu0 0.0
  %61 = vmatpush1.msra.mxu0 %v42
  %62 = vmatprep.subr.mxu0 0.0
  %63 = vmatpush1.msra.mxu0 %v43
  %64 = vmatprep.subr.mxu0 0.0
  %65 = vmatpush1.msra.mxu0 %v44
  %66 = vmatprep.subr.mxu0 0.0
  %67 = vmatpush1.msra.mxu0 %v45
  %68 = vmatprep.subr.mxu0 0.0
  %69 = vmatpush1.msra.mxu0 %v46
  %70 = vmatprep.subr.mxu0 0.0
  %71 = vmatpush1.msra.mxu0 %v47
  %72 = vmatprep.subr.mxu0 0.0
  %73 = vmatpush1.msra.mxu0 %v48
  %74 = vmatprep.subr.mxu0 0.0
  %75 = vmatpush1.msra.mxu0 %v49
  %76 = vmatprep.subr.mxu0 0.0
  %77 = vmatpush1.msra.mxu0 %v50
  %78 = vmatprep.subr.mxu0 0.0
  %79 = vmatpush1.msra.mxu0 %v51
  %80 = vmatprep.subr.mxu0 0.0
  %81 = vmatpush1.msra.mxu0 %v52
  %82 = vmatprep.subr.mxu0 0.0
  %83 = vmatpush1.msra.mxu0 %v53
  %84 = vmatprep.subr.mxu0 0.0
  %85 = vmatpush1.msra.mxu0 %v54
  %86 = vmatprep.subr.mxu0 0.0
  %87 = vmatpush1.msra.mxu0 %v55
  %88 = vmatprep.subr.mxu0 0.0
  %89 = vmatpush1.msra.mxu0 0.0
  %90 = vmatprep.subr.mxu0 0.0
  %91 = vmatpush1.msra.mxu0 0.0
  %92 = vmatprep.subr.mxu0 0.0
  %93 = vmatpush1.msra.mxu0 0.0
  %94 = vmatprep.subr.mxu0 0.0
  %95 = vmatpush1.msra.mxu0 0.0
  %96 = vmatprep.subr.mxu0 0.0
  %97 = vmatpush1.msra.mxu0 0.0
  %98 = vmatprep.subr.mxu0 0.0
  %99 = vmatpush1.msra.mxu0 0.0
  %100 = vmatprep.subr.mxu0 0.0
  %101 = vmatpush1.msra.mxu0 0.0
  %102 = vmatprep.subr.mxu0 0.0
  %103 = vmatpush1.msra.mxu0 0.0
  %104 = vmatprep.subr.mxu0 0.0
  %105 = vmatpush1.msra.mxu0 0.0
  %106 = vmatprep.subr.mxu0 0.0
  %107 = vmatpush1.msra.mxu0 0.0
  %108 = vmatprep.subr.mxu0 0.0
  %109 = vmatpush1.msra.mxu0 0.0
  %110 = vmatprep.subr.mxu0 0.0
  %111 = vmatpush1.msra.mxu0 0.0
  %112 = vmatprep.subr.mxu0 0.0
  %113 = vmatpush1.msra.mxu0 0.0
  %114 = vmatprep.subr.mxu0 0.0
  %115 = vmatpush1.msra.mxu0 0.0
  %116 = vmatprep.subr.mxu0 0.0
  %117 = vmatpush1.msra.mxu0 0.0
  %118 = vmatprep.subr.mxu0 0.0
  %119 = vmatpush1.msra.mxu0 0.0
  %120 = vmatprep.mubr.f32.mxu0 0.0
  %121 = vmatmul.mubr.f32.gmra.mrb[0].mxu0 %v38
  %v122 = vpop.f32.mrb[0].mxu0
  %v123 = vadd.f32 0.0, %v122
  %v124 = vpop.f32.mrb[0].mxu0
  %125 = vmatprep.mubr.f32.mxu0 0.0
  %126 = vmatmul.mubr.f32.gmra.mrb[0].mxu0 %v39
  %v127 = vpop.f32.mrb[0].mxu0
  %v128 = vadd.f32 0.0, %v127
  %v129 = vpop.f32.mrb[0].mxu0
  %130 = vdwg.mxu0
  %v131 = vld [vmem:[%s2] sm:$0xff]
  %v132 = vld [vmem:[%s2 + $0x8] sm:$0xff]
  %v133 = vld [vmem:[%s2 + $0x10] sm:$0xff]
  %v134 = vld [vmem:[%s2 + $0x18] sm:$0xff]
  %v135 = vld [vmem:[%s2 + $0x20] sm:$0xff]
  %v136 = vld [vmem:[%s2 + $0x28] sm:$0xff]
  %v137 = vld [vmem:[%s2 + $0x30] sm:$0xff]
  %v138 = vld [vmem:[%s2 + $0x38] sm:$0xff]
  %v139 = vld [vmem:[%s2 + $0x40] sm:$0xff]
  %v140 = vld [vmem:[%s2 + $0x48] sm:$0xff]
  %v141 = vld [vmem:[%s2 + $0x50] sm:$0xff]
  %v142 = vld [vmem:[%s2 + $0x58] sm:$0xff]
  %v143 = vld [vmem:[%s2 + $0x60] sm:$0xff]
  %v144 = vld [vmem:[%s2 + $0x68] sm:$0xff]
  %v145 = vld [vmem:[%s2 + $0x70] sm:$0xff]
  %v146 = vld [vmem:[%s2 + $0x78] sm:$0xff]
  %v147 = vld [vmem:[%s2 + $0x80] sm:$0xff]
  %v148 = vld [vmem:[%s2 + $0x88] sm:$0xff]
  %v149 = vld [vmem:[%s2 + $0x90] sm:$0xff]
  %v150 = vld [vmem:[%s2 + $0x98] sm:$0xff]
  %v151 = vld [vmem:[%s2 + $0xa0] sm:$0xff]
  %v152 = vld [vmem:[%s2 + $0xa8] sm:$0xff]
  %v153 = vld [vmem:[%s2 + $0xb0] sm:$0xff]
  %v154 = vld [vmem:[%s2 + $0xb8] sm:$0xff]
  %v155 = vld [vmem:[%s2 + $0xc0] sm:$0xff]
  %v156 = vld [vmem:[%s2 + $0xc8] sm:$0xff]
  %v157 = vld [vmem:[%s2 + $0xd0] sm:$0xff]
  %v158 = vld [vmem:[%s2 + $0xd8] sm:$0xff]
  %v159 = vld [vmem:[%s2 + $0xe0] sm:$0xff]
  %v160 = vld [vmem:[%s2 + $0xe8] sm:$0xff]
  %v161 = vld [vmem:[%s2 + $0xf0] sm:$0xff]
  %v162 = vld [vmem:[%s2 + $0xf8] sm:$0xff]
  %vm163 = vcmask 261120
  %v165 = vsel %vm163, %v123, 0
  %167 = vmatprep.subr.mxu0 0.0
  %168 = vmatpush1.msra.mxu0 %v131
  %169 = vmatprep.subr.mxu0 0.0
  %170 = vmatpush1.msra.mxu0 %v132
  %171 = vmatprep.subr.mxu0 0.0
  %172 = vmatpush1.msra.mxu0 %v133
  %173 = vmatprep.subr.mxu0 0.0
  %174 = vmatpush1.msra.mxu0 %v134
  %175 = vmatprep.subr.mxu0 0.0
  %176 = vmatpush1.msra.mxu0 0.0
  %177 = vmatprep.subr.mxu0 0.0
  %178 = vmatpush1.msra.mxu0 0.0
  %179 = vmatprep.subr.mxu0 0.0
  %180 = vmatpush1.msra.mxu0 0.0
  %181 = vmatprep.subr.mxu0 0.0
  %182 = vmatpush1.msra.mxu0 0.0
  %183 = vmatprep.subr.mxu0 0.0
  %184 = vmatpush1.msra.mxu0 0.0
  %185 = vmatprep.subr.mxu0 0.0
  %186 = vmatpush1.msra.mxu0 0.0
  %187 = vmatprep.subr.mxu0 0.0
  %188 = vmatpush1.msra.mxu0 0.0
  %189 = vmatprep.subr.mxu0 0.0
  %190 = vmatpush1.msra.mxu0 0.0
  %191 = vmatprep.subr.mxu0 0.0
  %192 = vmatpush1.msra.mxu0 0.0
  %193 = vmatprep.subr.mxu0 0.0
  %194 = vmatpush1.msra.mxu0 0.0
  %195 = vmatprep.subr.mxu0 0.0
  %196 = vmatpush1.msra.mxu0 0.0
  %197 = vmatprep.subr.mxu0 0.0
  %198 = vmatpush1.msra.mxu0 0.0
  %199 = vmatprep.subr.mxu0 0.0
  %200 = vmatpush1.msra.mxu0 0.0
  %201 = vmatprep.subr.mxu0 0.0
  %202 = vmatpush1.msra.mxu0 0.0
  %203 = vmatprep.subr.mxu0 0.0
  %204 = vmatpush1.msra.mxu0 0.0
  %205 = vmatprep.subr.mxu0 0.0
  %206 = vmatpush1.msra.mxu0 0.0
  %207 = vmatprep.subr.mxu0 0.0
  %208 = vmatpush1.msra.mxu0 0.0
  %209 = vmatprep.subr.mxu0 0.0
  %210 = vmatpush1.msra.mxu0 0.0
  %211 = vmatprep.subr.mxu0 0.0
  %212 = vmatpush1.msra.mxu0 0.0
  %213 = vmatprep.subr.mxu0 0.0
  %214 = vmatpush1.msra.mxu0 0.0
  %215 = vmatprep.subr.mxu0 0.0
  %216 = vmatpush1.msra.mxu0 0.0
  %217 = vmatprep.subr.mxu0 0.0
  %218 = vmatpush1.msra.mxu0 0.0
  %219 = vmatprep.subr.mxu0 0.0
  %220 = vmatpush1.msra.mxu0 0.0
  %221 = vmatprep.subr.mxu0 0.0
  %222 = vmatpush1.msra.mxu0 0.0
  %223 = vmatprep.subr.mxu0 0.0
  %224 = vmatpush1.msra.mxu0 0.0
  %225 = vmatprep.subr.mxu0 0.0
  %226 = vmatpush1.msra.mxu0 0.0
  %227 = vmatprep.subr.mxu0 0.0
  %228 = vmatpush1.msra.mxu0 0.0
  %229 = vmatprep.subr.mxu0 0.0
  %230 = vmatpush1.msra.mxu0 0.0
  %231 = vmatprep.mubr.f32.mxu0 0.0
  %232 = vmatmul.mubr.f32.gmra.mrb[0].mxu0 %v165
  %v233 = vpop.f32.mrb[0].mxu0
  %v234 = vadd.f32 0.0, %v233
  %v235 = vpop.f32.mrb[0].mxu0
  %236 = vdwg.mxu0
  %237 = vmatprep.subr.mxu0 0.0
  %238 = vmatpush1.msra.mxu0 %v135
  %239 = vmatprep.subr.mxu0 0.0
  %240 = vmatpush1.msra.mxu0 %v136
  %241 = vmatprep.subr.mxu0 0.0
  %242 = vmatpush1.msra.mxu0 %v137
  %243 = vmatprep.subr.mxu0 0.0
  %244 = vmatpush1.msra.mxu0 %v138
  %245 = vmatprep.subr.mxu0 0.0
  %246 = vmatpush1.msra.mxu0 0.0
  %247 = vmatprep.subr.mxu0 0.0
  %248 = vmatpush1.msra.mxu0 0.0
  %249 = vmatprep.subr.mxu0 0.0
  %250 = vmatpush1.msra.mxu0 0.0
  %251 = vmatprep.subr.mxu0 0.0
  %252 = vmatpush1.msra.mxu0 0.0
  %253 = vmatprep.subr.mxu0 0.0
  %254 = vmatpush1.msra.mxu0 0.0
  %255 = vmatprep.subr.mxu0 0.0
  %256 = vmatpush1.msra.mxu0 0.0
  %257 = vmatprep.subr.mxu0 0.0
  %258 = vmatpush1.msra.mxu0 0.0
  %259 = vmatprep.subr.mxu0 0.0
  %260 = vmatpush1.msra.mxu0 0.0
  %261 = vmatprep.subr.mxu0 0.0
  %262 = vmatpush1.msra.mxu0 0.0
  %263 = vmatprep.subr.mxu0 0.0
  %264 = vmatpush1.msra.mxu0 0.0
  %265 = vmatprep.subr.mxu0 0.0
  %266 = vmatpush1.msra.mxu0 0.0
  %267 = vmatprep.subr.mxu0 0.0
  %268 = vmatpush1.msra.mxu0 0.0
  %269 = vmatprep.subr.mxu0 0.0
  %270 = vmatpush1.msra.mxu0 0.0
  %271 = vmatprep.subr.mxu0 0.0
  %272 = vmatpush1.msra.mxu0 0.0
  %273 = vmatprep.subr.mxu0 0.0
  %274 = vmatpush1.msra.mxu0 0.0
  %275 = vmatprep.subr.mxu0 0.0
  %276 = vmatpush1.msra.mxu0 0.0
  %277 = vmatprep.subr.mxu0 0.0
  %278 = vmatpush1.msra.mxu0 0.0
  %279 = vmatprep.subr.mxu0 0.0
  %280 = vmatpush1.msra.mxu0 0.0
  %281 = vmatprep.subr.mxu0 0.0
  %282 = vmatpush1.msra.mxu0 0.0
  %283 = vmatprep.subr.mxu0 0.0
  %284 = vmatpush1.msra.mxu0 0.0
  %285 = vmatprep.subr.mxu0 0.0
  %286 = vmatpush1.msra.mxu0 0.0
  %287 = vmatprep.subr.mxu0 0.0
  %288 = vmatpush1.msra.mxu0 0.0
  %289 = vmatprep.subr.mxu0 0.0
  %290 = vmatpush1.msra.mxu0 0.0
  %291 = vmatprep.subr.mxu0 0.0
  %292 = vmatpush1.msra.mxu0 0.0
  %293 = vmatprep.subr.mxu0 0.0
  %294 = vmatpush1.msra.mxu0 0.0
  %295 = vmatprep.subr.mxu0 0.0
  %296 = vmatpush1.msra.mxu0 0.0
  %297 = vmatprep.subr.mxu0 0.0
  %298 = vmatpush1.msra.mxu0 0.0
  %299 = vmatprep.subr.mxu0 0.0
  %300 = vmatpush1.msra.mxu0 0.0
  %301 = vmatprep.mubr.f32.mxu0 0.0
  %302 = vmatmul.mubr.f32.gmra.mrb[0].mxu0 %v165
  %v303 = vpop.f32.mrb[0].mxu0
  %v304 = vadd.f32 0.0, %v303
  %v305 = vpop.f32.mrb[0].mxu0
  %306 = vdwg.mxu0
  %307 = vmatprep.subr.mxu0 0.0
  %308 = vmatpush1.msra.mxu0 %v139
  %309 = vmatprep.subr.mxu0 0.0
  %310 = vmatpush1.msra.mxu0 %v140
  %311 = vmatprep.subr.mxu0 0.0
  %312 = vmatpush1.msra.mxu0 %v141
  %313 = vmatprep.subr.mxu0 0.0
  %314 = vmatpush1.msra.mxu0 %v142
  %315 = vmatprep.subr.mxu0 0.0
  %316 = vmatpush1.msra.mxu0 0.0
  %317 = vmatprep.subr.mxu0 0.0
  %318 = vmatpush1.msra.mxu0 0.0
  %319 = vmatprep.subr.mxu0 0.0
  %320 = vmatpush1.msra.mxu0 0.0
  %321 = vmatprep.subr.mxu0 0.0
  %322 = vmatpush1.msra.mxu0 0.0
  %323 = vmatprep.subr.mxu0 0.0
  %324 = vmatpush1.msra.mxu0 0.0
  %325 = vmatprep.subr.mxu0 0.0
  %326 = vmatpush1.msra.mxu0 0.0
  %327 = vmatprep.subr.mxu0 0.0
  %328 = vmatpush1.msra.mxu0 0.0
  %329 = vmatprep.subr.mxu0 0.0
  %330 = vmatpush1.msra.mxu0 0.0
  %331 = vmatprep.subr.mxu0 0.0
  %332 = vmatpush1.msra.mxu0 0.0
  %333 = vmatprep.subr.mxu0 0.0
  %334 = vmatpush1.msra.mxu0 0.0
  %335 = vmatprep.subr.mxu0 0.0
  %336 = vmatpush1.msra.mxu0 0.0
  %337 = vmatprep.subr.mxu0 0.0
  %338 = vmatpush1.msra.mxu0 0.0
  %339 = vmatprep.subr.mxu0 0.0
  %340 = vmatpush1.msra.mxu0 0.0
  %341 = vmatprep.subr.mxu0 0.0
  %342 = vmatpush1.msra.mxu0 0.0
  %343 = vmatprep.subr.mxu0 0.0
  %344 = vmatpush1.msra.mxu0 0.0
  %345 = vmatprep.subr.mxu0 0.0
  %346 = vmatpush1.msra.mxu0 0.0
  %347 = vmatprep.subr.mxu0 0.0
  %348 = vmatpush1.msra.mxu0 0.0
  %349 = vmatprep.subr.mxu0 0.0
  %350 = vmatpush1.msra.mxu0 0.0
  %351 = vmatprep.subr.mxu0 0.0
  %352 = vmatpush1.msra.mxu0 0.0
  %353 = vmatprep.subr.mxu0 0.0
  %354 = vmatpush1.msra.mxu0 0.0
  %355 = vmatprep.subr.mxu0 0.0
  %356 = vmatpush1.msra.mxu0 0.0
  %357 = vmatprep.subr.mxu0 0.0
  %358 = vmatpush1.msra.mxu0 0.0
  %359 = vmatprep.subr.mxu0 0.0
  %360 = vmatpush1.msra.mxu0 0.0
  %361 = vmatprep.subr.mxu0 0.0
  %362 = vmatpush1.msra.mxu0 0.0
  %363 = vmatprep.subr.mxu0 0.0
  %364 = vmatpush1.msra.mxu0 0.0
  %365 = vmatprep.subr.mxu0 0.0
  %366 = vmatpush1.msra.mxu0 0.0
  %367 = vmatprep.subr.mxu0 0.0
  %368 = vmatpush1.msra.mxu0 0.0
  %369 = vmatprep.subr.mxu0 0.0
  %370 = vmatpush1.msra.mxu0 0.0
  %371 = vmatprep.mubr.f32.mxu0 0.0
  %372 = vmatmul.mubr.f32.gmra.mrb[0].mxu0 %v165
  %v373 = vpop.f32.mrb[0].mxu0
  %v374 = vadd.f32 0.0, %v373
  %v375 = vpop.f32.mrb[0].mxu0
  %376 = vdwg.mxu0
  %377 = vmatprep.subr.mxu0 0.0
  %378 = vmatpush1.msra.mxu0 %v143
  %379 = vmatprep.subr.mxu0 0.0
  %380 = vmatpush1.msra.mxu0 %v144
  %381 = vmatprep.subr.mxu0 0.0
  %382 = vmatpush1.msra.mxu0 %v145
  %383 = vmatprep.subr.mxu0 0.0
  %384 = vmatpush1.msra.mxu0 %v146
  %385 = vmatprep.subr.mxu0 0.0
  %386 = vmatpush1.msra.mxu0 0.0
  %387 = vmatprep.subr.mxu0 0.0
  %388 = vmatpush1.msra.mxu0 0.0
  %389 = vmatprep.subr.mxu0 0.0
  %390 = vmatpush1.msra.mxu0 0.0
  %391 = vmatprep.subr.mxu0 0.0
  %392 = vmatpush1.msra.mxu0 0.0
  %393 = vmatprep.subr.mxu0 0.0
  %394 = vmatpush1.msra.mxu0 0.0
  %395 = vmatprep.subr.mxu0 0.0
  %396 = vmatpush1.msra.mxu0 0.0
  %397 = vmatprep.subr.mxu0 0.0
  %398 = vmatpush1.msra.mxu0 0.0
  %399 = vmatprep.subr.mxu0 0.0
  %400 = vmatpush1.msra.mxu0 0.0
  %401 = vmatprep.subr.mxu0 0.0
  %402 = vmatpush1.msra.mxu0 0.0
  %403 = vmatprep.subr.mxu0 0.0
  %404 = vmatpush1.msra.mxu0 0.0
  %405 = vmatprep.subr.mxu0 0.0
  %406 = vmatpush1.msra.mxu0 0.0
  %407 = vmatprep.subr.mxu0 0.0
  %408 = vmatpush1.msra.mxu0 0.0
  %409 = vmatprep.subr.mxu0 0.0
  %410 = vmatpush1.msra.mxu0 0.0
  %411 = vmatprep.subr.mxu0 0.0
  %412 = vmatpush1.msra.mxu0 0.0
  %413 = vmatprep.subr.mxu0 0.0
  %414 = vmatpush1.msra.mxu0 0.0
  %415 = vmatprep.subr.mxu0 0.0
  %416 = vmatpush1.msra.mxu0 0.0
  %417 = vmatprep.subr.mxu0 0.0
  %418 = vmatpush1.msra.mxu0 0.0
  %419 = vmatprep.subr.mxu0 0.0
  %420 = vmatpush1.msra.mxu0 0.0
  %421 = vmatprep.subr.mxu0 0.0
  %422 = vmatpush1.msra.mxu0 0.0
  %423 = vmatprep.subr.mxu0 0.0
  %424 = vmatpush1.msra.mxu0 0.0
  %425 = vmatprep.subr.mxu0 0.0
  %426 = vmatpush1.msra.mxu0 0.0
  %427 = vmatprep.subr.mxu0 0.0
  %428 = vmatpush1.msra.mxu0 0.0
  %429 = vmatprep.subr.mxu0 0.0
  %430 = vmatpush1.msra.mxu0 0.0
  %431 = vmatprep.subr.mxu0 0.0
  %432 = vmatpush1.msra.mxu0 0.0
  %433 = vmatprep.subr.mxu0 0.0
  %434 = vmatpush1.msra.mxu0 0.0
  %435 = vmatprep.subr.mxu0 0.0
  %436 = vmatpush1.msra.mxu0 0.0
  %437 = vmatprep.subr.mxu0 0.0
  %438 = vmatpush1.msra.mxu0 0.0
  %439 = vmatprep.subr.mxu0 0.0
  %440 = vmatpush1.msra.mxu0 0.0
  %441 = vmatprep.mubr.f32.mxu0 0.0
  %442 = vmatmul.mubr.f32.gmra.mrb[0].mxu0 %v165
  %v443 = vpop.f32.mrb[0].mxu0
  %v444 = vadd.f32 0.0, %v443
  %v445 = vpop.f32.mrb[0].mxu0
  %446 = vdwg.mxu0
  %v448 = vsel %vm163, %v128, 0
  %450 = vmatprep.subr.mxu0 0.0
  %451 = vmatpush1.msra.mxu0 %v147
  %452 = vmatprep.subr.mxu0 0.0
  %453 = vmatpush1.msra.mxu0 %v148
  %454 = vmatprep.subr.mxu0 0.0
  %455 = vmatpush1.msra.mxu0 %v149
  %456 = vmatprep.subr.mxu0 0.0
  %457 = vmatpush1.msra.mxu0 %v150
  %458 = vmatprep.subr.mxu0 0.0
  %459 = vmatpush1.msra.mxu0 0.0
  %460 = vmatprep.subr.mxu0 0.0
  %461 = vmatpush1.msra.mxu0 0.0
  %462 = vmatprep.subr.mxu0 0.0
  %463 = vmatpush1.msra.mxu0 0.0
  %464 = vmatprep.subr.mxu0 0.0
  %465 = vmatpush1.msra.mxu0 0.0
  %466 = vmatprep.subr.mxu0 0.0
  %467 = vmatpush1.msra.mxu0 0.0
  %468 = vmatprep.subr.mxu0 0.0
  %469 = vmatpush1.msra.mxu0 0.0
  %470 = vmatprep.subr.mxu0 0.0
  %471 = vmatpush1.msra.mxu0 0.0
  %472 = vmatprep.subr.mxu0 0.0
  %473 = vmatpush1.msra.mxu0 0.0
  %474 = vmatprep.subr.mxu0 0.0
  %475 = vmatpush1.msra.mxu0 0.0
  %476 = vmatprep.subr.mxu0 0.0
  %477 = vmatpush1.msra.mxu0 0.0
  %478 = vmatprep.subr.mxu0 0.0
  %479 = vmatpush1.msra.mxu0 0.0
  %480 = vmatprep.subr.mxu0 0.0
  %481 = vmatpush1.msra.mxu0 0.0
  %482 = vmatprep.subr.mxu0 0.0
  %483 = vmatpush1.msra.mxu0 0.0
  %484 = vmatprep.subr.mxu0 0.0
  %485 = vmatpush1.msra.mxu0 0.0
  %486 = vmatprep.subr.mxu0 0.0
  %487 = vmatpush1.msra.mxu0 0.0
  %488 = vmatprep.subr.mxu0 0.0
  %489 = vmatpush1.msra.mxu0 0.0
  %490 = vmatprep.subr.mxu0 0.0
  %491 = vmatpush1.msra.mxu0 0.0
  %492 = vmatprep.subr.mxu0 0.0
  %493 = vmatpush1.msra.mxu0 0.0
  %494 = vmatprep.subr.mxu0 0.0
  %495 = vmatpush1.msra.mxu0 0.0
  %496 = vmatprep.subr.mxu0 0.0
  %497 = vmatpush1.msra.mxu0 0.0
  %498 = vmatprep.subr.mxu0 0.0
  %499 = vmatpush1.msra.mxu0 0.0
  %500 = vmatprep.subr.mxu0 0.0
  %501 = vmatpush1.msra.mxu0 0.0
  %502 = vmatprep.subr.mxu0 0.0
  %503 = vmatpush1.msra.mxu0 0.0
  %504 = vmatprep.subr.mxu0 0.0
  %505 = vmatpush1.msra.mxu0 0.0
  %506 = vmatprep.subr.mxu0 0.0
  %507 = vmatpush1.msra.mxu0 0.0
  %508 = vmatprep.subr.mxu0 0.0
  %509 = vmatpush1.msra.mxu0 0.0
  %510 = vmatprep.subr.mxu0 0.0
  %511 = vmatpush1.msra.mxu0 0.0
  %512 = vmatprep.subr.mxu0 0.0
  %513 = vmatpush1.msra.mxu0 0.0
  %514 = vmatprep.mubr.f32.mxu0 0.0
  %515 = vmatmul.mubr.f32.gmra.mrb[0].mxu0 %v448
  %v516 = vpop.f32.mrb[0].mxu0
  %v517 = vadd.f32 0.0, %v516
  %v518 = vpop.f32.mrb[0].mxu0
  %519 = vdwg.mxu0
  %520 = vmatprep.subr.mxu0 0.0
  %521 = vmatpush1.msra.mxu0 %v151
  %522 = vmatprep.subr.mxu0 0.0
  %523 = vmatpush1.msra.mxu0 %v152
  %524 = vmatprep.subr.mxu0 0.0
  %525 = vmatpush1.msra.mxu0 %v153
  %526 = vmatprep.subr.mxu0 0.0
  %527 = vmatpush1.msra.mxu0 %v154
  %528 = vmatprep.subr.mxu0 0.0
  %529 = vmatpush1.msra.mxu0 0.0
  %530 = vmatprep.subr.mxu0 0.0
  %531 = vmatpush1.msra.mxu0 0.0
  %532 = vmatprep.subr.mxu0 0.0
  %533 = vmatpush1.msra.mxu0 0.0
  %534 = vmatprep.subr.mxu0 0.0
  %535 = vmatpush1.msra.mxu0 0.0
  %536 = vmatprep.subr.mxu0 0.0
  %537 = vmatpush1.msra.mxu0 0.0
  %538 = vmatprep.subr.mxu0 0.0
  %539 = vmatpush1.msra.mxu0 0.0
  %540 = vmatprep.subr.mxu0 0.0
  %541 = vmatpush1.msra.mxu0 0.0
  %542 = vmatprep.subr.mxu0 0.0
  %543 = vmatpush1.msra.mxu0 0.0
  %544 = vmatprep.subr.mxu0 0.0
  %545 = vmatpush1.msra.mxu0 0.0
  %546 = vmatprep.subr.mxu0 0.0
  %547 = vmatpush1.msra.mxu0 0.0
  %548 = vmatprep.subr.mxu0 0.0
  %549 = vmatpush1.msra.mxu0 0.0
  %550 = vmatprep.subr.mxu0 0.0
  %551 = vmatpush1.msra.mxu0 0.0
  %552 = vmatprep.subr.mxu0 0.0
  %553 = vmatpush1.msra.mxu0 0.0
  %554 = vmatprep.subr.mxu0 0.0
  %555 = vmatpush1.msra.mxu0 0.0
  %556 = vmatprep.subr.mxu0 0.0
  %557 = vmatpush1.msra.mxu0 0.0
  %558 = vmatprep.subr.mxu0 0.0
  %559 = vmatpush1.msra.mxu0 0.0
  %560 = vmatprep.subr.mxu0 0.0
  %561 = vmatpush1.msra.mxu0 0.0
  %562 = vmatprep.subr.mxu0 0.0
  %563 = vmatpush1.msra.mxu0 0.0
  %564 = vmatprep.subr.mxu0 0.0
  %565 = vmatpush1.msra.mxu0 0.0
  %566 = vmatprep.subr.mxu0 0.0
  %567 = vmatpush1.msra.mxu0 0.0
  %568 = vmatprep.subr.mxu0 0.0
  %569 = vmatpush1.msra.mxu0 0.0
  %570 = vmatprep.subr.mxu0 0.0
  %571 = vmatpush1.msra.mxu0 0.0
  %572 = vmatprep.subr.mxu0 0.0
  %573 = vmatpush1.msra.mxu0 0.0
  %574 = vmatprep.subr.mxu0 0.0
  %575 = vmatpush1.msra.mxu0 0.0
  %576 = vmatprep.subr.mxu0 0.0
  %577 = vmatpush1.msra.mxu0 0.0
  %578 = vmatprep.subr.mxu0 0.0
  %579 = vmatpush1.msra.mxu0 0.0
  %580 = vmatprep.subr.mxu0 0.0
  %581 = vmatpush1.msra.mxu0 0.0
  %582 = vmatprep.subr.mxu0 0.0
  %583 = vmatpush1.msra.mxu0 0.0
  %584 = vmatprep.mubr.f32.mxu0 0.0
  %585 = vmatmul.mubr.f32.gmra.mrb[0].mxu0 %v448
  %v586 = vpop.f32.mrb[0].mxu0
  %v587 = vadd.f32 0.0, %v586
  %v588 = vpop.f32.mrb[0].mxu0
  %589 = vdwg.mxu0
  %590 = vmatprep.subr.mxu0 0.0
  %591 = vmatpush1.msra.mxu0 %v155
  %592 = vmatprep.subr.mxu0 0.0
  %593 = vmatpush1.msra.mxu0 %v156
  %594 = vmatprep.subr.mxu0 0.0
  %595 = vmatpush1.msra.mxu0 %v157
  %596 = vmatprep.subr.mxu0 0.0
  %597 = vmatpush1.msra.mxu0 %v158
  %598 = vmatprep.subr.mxu0 0.0
  %599 = vmatpush1.msra.mxu0 0.0
  %600 = vmatprep.subr.mxu0 0.0
  %601 = vmatpush1.msra.mxu0 0.0
  %602 = vmatprep.subr.mxu0 0.0
  %603 = vmatpush1.msra.mxu0 0.0
  %604 = vmatprep.subr.mxu0 0.0
  %605 = vmatpush1.msra.mxu0 0.0
  %606 = vmatprep.subr.mxu0 0.0
  %607 = vmatpush1.msra.mxu0 0.0
  %608 = vmatprep.subr.mxu0 0.0
  %609 = vmatpush1.msra.mxu0 0.0
  %610 = vmatprep.subr.mxu0 0.0
  %611 = vmatpush1.msra.mxu0 0.0
  %612 = vmatprep.subr.mxu0 0.0
  %613 = vmatpush1.msra.mxu0 0.0
  %614 = vmatprep.subr.mxu0 0.0
  %615 = vmatpush1.msra.mxu0 0.0
  %616 = vmatprep.subr.mxu0 0.0
  %617 = vmatpush1.msra.mxu0 0.0
  %618 = vmatprep.subr.mxu0 0.0
  %619 = vmatpush1.msra.mxu0 0.0
  %620 = vmatprep.subr.mxu0 0.0
  %621 = vmatpush1.msra.mxu0 0.0
  %622 = vmatprep.subr.mxu0 0.0
  %623 = vmatpush1.msra.mxu0 0.0
  %624 = vmatprep.subr.mxu0 0.0
  %625 = vmatpush1.msra.mxu0 0.0
  %626 = vmatprep.subr.mxu0 0.0
  %627 = vmatpush1.msra.mxu0 0.0
  %628 = vmatprep.subr.mxu0 0.0
  %629 = vmatpush1.msra.mxu0 0.0
  %630 = vmatprep.subr.mxu0 0.0
  %631 = vmatpush1.msra.mxu0 0.0
  %632 = vmatprep.subr.mxu0 0.0
  %633 = vmatpush1.msra.mxu0 0.0
  %634 = vmatprep.subr.mxu0 0.0
  %635 = vmatpush1.msra.mxu0 0.0
  %636 = vmatprep.subr.mxu0 0.0
  %637 = vmatpush1.msra.mxu0 0.0
  %638 = vmatprep.subr.mxu0 0.0
  %639 = vmatpush1.msra.mxu0 0.0
  %640 = vmatprep.subr.mxu0 0.0
  %641 = vmatpush1.msra.mxu0 0.0
  %642 = vmatprep.subr.mxu0 0.0
  %643 = vmatpush1.msra.mxu0 0.0
  %644 = vmatprep.subr.mxu0 0.0
  %645 = vmatpush1.msra.mxu0 0.0
  %646 = vmatprep.subr.mxu0 0.0
  %647 = vmatpush1.msra.mxu0 0.0
  %648 = vmatprep.subr.mxu0 0.0
  %649 = vmatpush1.msra.mxu0 0.0
  %650 = vmatprep.subr.mxu0 0.0
  %651 = vmatpush1.msra.mxu0 0.0
  %652 = vmatprep.subr.mxu0 0.0
  %653 = vmatpush1.msra.mxu0 0.0
  %654 = vmatprep.mubr.f32.mxu0 0.0
  %655 = vmatmul.mubr.f32.gmra.mrb[0].mxu0 %v448
  %v656 = vpop.f32.mrb[0].mxu0
  %v657 = vadd.f32 0.0, %v656
  %v658 = vpop.f32.mrb[0].mxu0
  %659 = vdwg.mxu0
  %660 = vmatprep.subr.mxu0 0.0
  %661 = vmatpush1.msra.mxu0 %v159
  %662 = vmatprep.subr.mxu0 0.0
  %663 = vmatpush1.msra.mxu0 %v160
  %664 = vmatprep.subr.mxu0 0.0
  %665 = vmatpush1.msra.mxu0 %v161
  %666 = vmatprep.subr.mxu0 0.0
  %667 = vmatpush1.msra.mxu0 %v162
  %668 = vmatprep.subr.mxu0 0.0
  %669 = vmatpush1.msra.mxu0 0.0
  %670 = vmatprep.subr.mxu0 0.0
  %671 = vmatpush1.msra.mxu0 0.0
  %672 = vmatprep.subr.mxu0 0.0
  %673 = vmatpush1.msra.mxu0 0.0
  %674 = vmatprep.subr.mxu0 0.0
  %675 = vmatpush1.msra.mxu0 0.0
  %676 = vmatprep.subr.mxu0 0.0
  %677 = vmatpush1.msra.mxu0 0.0
  %678 = vmatprep.subr.mxu0 0.0
  %679 = vmatpush1.msra.mxu0 0.0
  %680 = vmatprep.subr.mxu0 0.0
  %681 = vmatpush1.msra.mxu0 0.0
  %682 = vmatprep.subr.mxu0 0.0
  %683 = vmatpush1.msra.mxu0 0.0
  %684 = vmatprep.subr.mxu0 0.0
  %685 = vmatpush1.msra.mxu0 0.0
  %686 = vmatprep.subr.mxu0 0.0
  %687 = vmatpush1.msra.mxu0 0.0
  %688 = vmatprep.subr.mxu0 0.0
  %689 = vmatpush1.msra.mxu0 0.0
  %690 = vmatprep.subr.mxu0 0.0
  %691 = vmatpush1.msra.mxu0 0.0
  %692 = vmatprep.subr.mxu0 0.0
  %693 = vmatpush1.msra.mxu0 0.0
  %694 = vmatprep.subr.mxu0 0.0
  %695 = vmatpush1.msra.mxu0 0.0
  %696 = vmatprep.subr.mxu0 0.0
  %697 = vmatpush1.msra.mxu0 0.0
  %698 = vmatprep.subr.mxu0 0.0
  %699 = vmatpush1.msra.mxu0 0.0
  %700 = vmatprep.subr.mxu0 0.0
  %701 = vmatpush1.msra.mxu0 0.0
  %702 = vmatprep.subr.mxu0 0.0
  %703 = vmatpush1.msra.mxu0 0.0
  %704 = vmatprep.subr.mxu0 0.0
  %705 = vmatpush1.msra.mxu0 0.0
  %706 = vmatprep.subr.mxu0 0.0
  %707 = vmatpush1.msra.mxu0 0.0
  %708 = vmatprep.subr.mxu0 0.0
  %709 = vmatpush1.msra.mxu0 0.0
  %710 = vmatprep.subr.mxu0 0.0
  %711 = vmatpush1.msra.mxu0 0.0
  %712 = vmatprep.subr.mxu0 0.0
  %713 = vmatpush1.msra.mxu0 0.0
  %714 = vmatprep.subr.mxu0 0.0
  %715 = vmatpush1.msra.mxu0 0.0
  %716 = vmatprep.subr.mxu0 0.0
  %717 = vmatpush1.msra.mxu0 0.0
  %718 = vmatprep.subr.mxu0 0.0
  %719 = vmatpush1.msra.mxu0 0.0
  %720 = vmatprep.subr.mxu0 0.0
  %721 = vmatpush1.msra.mxu0 0.0
  %722 = vmatprep.subr.mxu0 0.0
  %723 = vmatpush1.msra.mxu0 0.0
  %724 = vmatprep.mubr.f32.mxu0 0.0
  %725 = vmatmul.mubr.f32.gmra.mrb[0].mxu0 %v448
  %v726 = vpop.f32.mrb[0].mxu0
  %v727 = vadd.f32 0.0, %v726
  %v728 = vpop.f32.mrb[0].mxu0
  %729 = vdwg.mxu0
  %731 = vrot.lane.b32.xlu0 %v234, 120
  %v732 = vpop.permute.xlu0 %731
  %vm733 = vcmask 64512
  %v734 = vsel %vm733, %v234, 0
  %v736 = vsel %vm733, %v732, 0
  %738 = vmatprep.subr.mxu0 0.0
  %739 = vmatpush1.xpose.msra.mxu0 %v736
  %740 = vmatprep.subr.mxu0 0.0
  %741 = vmatpush1.xpose.msra.mxu0 0.0
  %742 = vmatprep.subr.mxu0 0.0
  %743 = vmatpush1.xpose.msra.mxu0 0.0
  %744 = vmatprep.subr.mxu0 0.0
  %745 = vmatpush1.xpose.msra.mxu0 0.0
  %746 = vmatprep.subr.mxu0 0.0
  %747 = vmatpush1.xpose.msra.mxu0 0.0
  %748 = vmatprep.subr.mxu0 0.0
  %749 = vmatpush1.xpose.msra.mxu0 0.0
  %750 = vmatprep.subr.mxu0 0.0
  %751 = vmatpush1.xpose.msra.mxu0 0.0
  %752 = vmatprep.subr.mxu0 0.0
  %753 = vmatpush1.xpose.msra.mxu0 0.0
  %754 = vmatprep.subr.mxu0 0.0
  %755 = vmatpush1.xpose.msra.mxu0 0.0
  %756 = vmatprep.subr.mxu0 0.0
  %757 = vmatpush1.xpose.msra.mxu0 0.0
  %758 = vmatprep.subr.mxu0 0.0
  %759 = vmatpush1.xpose.msra.mxu0 0.0
  %760 = vmatprep.subr.mxu0 0.0
  %761 = vmatpush1.xpose.msra.mxu0 0.0
  %762 = vmatprep.subr.mxu0 0.0
  %763 = vmatpush1.xpose.msra.mxu0 0.0
  %764 = vmatprep.subr.mxu0 0.0
  %765 = vmatpush1.xpose.msra.mxu0 0.0
  %766 = vmatprep.subr.mxu0 0.0
  %767 = vmatpush1.xpose.msra.mxu0 0.0
  %768 = vmatprep.subr.mxu0 0.0
  %769 = vmatpush1.xpose.msra.mxu0 0.0
  %770 = vmatprep.subr.mxu0 0.0
  %771 = vmatpush1.xpose.msra.mxu0 0.0
  %772 = vmatprep.subr.mxu0 0.0
  %773 = vmatpush1.xpose.msra.mxu0 0.0
  %774 = vmatprep.subr.mxu0 0.0
  %775 = vmatpush1.xpose.msra.mxu0 0.0
  %776 = vmatprep.subr.mxu0 0.0
  %777 = vmatpush1.xpose.msra.mxu0 0.0
  %778 = vmatprep.subr.mxu0 0.0
  %779 = vmatpush1.xpose.msra.mxu0 0.0
  %780 = vmatprep.subr.mxu0 0.0
  %781 = vmatpush1.xpose.msra.mxu0 0.0
  %782 = vmatprep.subr.mxu0 0.0
  %783 = vmatpush1.xpose.msra.mxu0 0.0
  %784 = vmatprep.subr.mxu0 0.0
  %785 = vmatpush1.xpose.msra.mxu0 0.0
  %786 = vmatprep.subr.mxu0 0.0
  %787 = vmatpush1.xpose.msra.mxu0 0.0
  %788 = vmatprep.subr.mxu0 0.0
  %789 = vmatpush1.xpose.msra.mxu0 0.0
  %790 = vmatprep.subr.mxu0 0.0
  %791 = vmatpush1.xpose.msra.mxu0 0.0
  %792 = vmatprep.subr.mxu0 0.0
  %793 = vmatpush1.xpose.msra.mxu0 0.0
  %794 = vmatprep.subr.mxu0 0.0
  %795 = vmatpush1.xpose.msra.mxu0 0.0
  %796 = vmatprep.subr.mxu0 0.0
  %797 = vmatpush1.xpose.msra.mxu0 0.0
  %798 = vmatprep.subr.mxu0 0.0
  %799 = vmatpush1.xpose.msra.mxu0 0.0
  %800 = vmatprep.subr.mxu0 0.0
  %801 = vmatpush1.xpose.msra.mxu0 0.0
  %802 = vmatprep.mubr.f32.mxu0 0.0
  %803 = vmatmul.mubr.f32.gmra.mrb[0].mxu0 %v734
  %v804 = vpop.f32.mrb[0].mxu0
  %v805 = vadd.f32 0.0, %v804
  %v806 = vpop.f32.mrb[0].mxu0
  %807 = vdwg.mxu0
  %809 = vrot.lane.b32.xlu0 %v304, 120
  %v810 = vpop.permute.xlu0 %809
  %v811 = vsel %vm733, %v304, 0
  %v813 = vsel %vm733, %v810, 0
  %815 = vmatprep.subr.mxu0 0.0
  %816 = vmatpush1.xpose.msra.mxu0 %v813
  %817 = vmatprep.subr.mxu0 0.0
  %818 = vmatpush1.xpose.msra.mxu0 0.0
  %819 = vmatprep.subr.mxu0 0.0
  %820 = vmatpush1.xpose.msra.mxu0 0.0
  %821 = vmatprep.subr.mxu0 0.0
  %822 = vmatpush1.xpose.msra.mxu0 0.0
  %823 = vmatprep.subr.mxu0 0.0
  %824 = vmatpush1.xpose.msra.mxu0 0.0
  %825 = vmatprep.subr.mxu0 0.0
  %826 = vmatpush1.xpose.msra.mxu0 0.0
  %827 = vmatprep.subr.mxu0 0.0
  %828 = vmatpush1.xpose.msra.mxu0 0.0
  %829 = vmatprep.subr.mxu0 0.0
  %830 = vmatpush1.xpose.msra.mxu0 0.0
  %831 = vmatprep.subr.mxu0 0.0
  %832 = vmatpush1.xpose.msra.mxu0 0.0
  %833 = vmatprep.subr.mxu0 0.0
  %834 = vmatpush1.xpose.msra.mxu0 0.0
  %835 = vmatprep.subr.mxu0 0.0
  %836 = vmatpush1.xpose.msra.mxu0 0.0
  %837 = vmatprep.subr.mxu0 0.0
  %838 = vmatpush1.xpose.msra.mxu0 0.0
  %839 = vmatprep.subr.mxu0 0.0
  %840 = vmatpush1.xpose.msra.mxu0 0.0
  %841 = vmatprep.subr.mxu0 0.0
  %842 = vmatpush1.xpose.msra.mxu0 0.0
  %843 = vmatprep.subr.mxu0 0.0
  %844 = vmatpush1.xpose.msra.mxu0 0.0
  %845 = vmatprep.subr.mxu0 0.0
  %846 = vmatpush1.xpose.msra.mxu0 0.0
  %847 = vmatprep.subr.mxu0 0.0
  %848 = vmatpush1.xpose.msra.mxu0 0.0
  %849 = vmatprep.subr.mxu0 0.0
  %850 = vmatpush1.xpose.msra.mxu0 0.0
  %851 = vmatprep.subr.mxu0 0.0
  %852 = vmatpush1.xpose.msra.mxu0 0.0
  %853 = vmatprep.subr.mxu0 0.0
  %854 = vmatpush1.xpose.msra.mxu0 0.0
  %855 = vmatprep.subr.mxu0 0.0
  %856 = vmatpush1.xpose.msra.mxu0 0.0
  %857 = vmatprep.subr.mxu0 0.0
  %858 = vmatpush1.xpose.msra.mxu0 0.0
  %859 = vmatprep.subr.mxu0 0.0
  %860 = vmatpush1.xpose.msra.mxu0 0.0
  %861 = vmatprep.subr.mxu0 0.0
  %862 = vmatpush1.xpose.msra.mxu0 0.0
  %863 = vmatprep.subr.mxu0 0.0
  %864 = vmatpush1.xpose.msra.mxu0 0.0
  %865 = vmatprep.subr.mxu0 0.0
  %866 = vmatpush1.xpose.msra.mxu0 0.0
  %867 = vmatprep.subr.mxu0 0.0
  %868 = vmatpush1.xpose.msra.mxu0 0.0
  %869 = vmatprep.subr.mxu0 0.0
  %870 = vmatpush1.xpose.msra.mxu0 0.0
  %871 = vmatprep.subr.mxu0 0.0
  %872 = vmatpush1.xpose.msra.mxu0 0.0
  %873 = vmatprep.subr.mxu0 0.0
  %874 = vmatpush1.xpose.msra.mxu0 0.0
  %875 = vmatprep.subr.mxu0 0.0
  %876 = vmatpush1.xpose.msra.mxu0 0.0
  %877 = vmatprep.subr.mxu0 0.0
  %878 = vmatpush1.xpose.msra.mxu0 0.0
  %879 = vmatprep.mubr.f32.mxu0 0.0
  %880 = vmatmul.mubr.f32.gmra.mrb[0].mxu0 %v811
  %v881 = vpop.f32.mrb[0].mxu0
  %v882 = vadd.f32 0.0, %v881
  %v883 = vpop.f32.mrb[0].mxu0
  %884 = vdwg.mxu0
  %886 = vrot.lane.b32.xlu0 %v374, 120
  %v887 = vpop.permute.xlu0 %886
  %v888 = vsel %vm733, %v374, 0
  %v890 = vsel %vm733, %v887, 0
  %892 = vmatprep.subr.mxu0 0.0
  %893 = vmatpush1.xpose.msra.mxu0 %v890
  %894 = vmatprep.subr.mxu0 0.0
  %895 = vmatpush1.xpose.msra.mxu0 0.0
  %896 = vmatprep.subr.mxu0 0.0
  %897 = vmatpush1.xpose.msra.mxu0 0.0
  %898 = vmatprep.subr.mxu0 0.0
  %899 = vmatpush1.xpose.msra.mxu0 0.0
  %900 = vmatprep.subr.mxu0 0.0
  %901 = vmatpush1.xpose.msra.mxu0 0.0
  %902 = vmatprep.subr.mxu0 0.0
  %903 = vmatpush1.xpose.msra.mxu0 0.0
  %904 = vmatprep.subr.mxu0 0.0
  %905 = vmatpush1.xpose.msra.mxu0 0.0
  %906 = vmatprep.subr.mxu0 0.0
  %907 = vmatpush1.xpose.msra.mxu0 0.0
  %908 = vmatprep.subr.mxu0 0.0
  %909 = vmatpush1.xpose.msra.mxu0 0.0
  %910 = vmatprep.subr.mxu0 0.0
  %911 = vmatpush1.xpose.msra.mxu0 0.0
  %912 = vmatprep.subr.mxu0 0.0
  %913 = vmatpush1.xpose.msra.mxu0 0.0
  %914 = vmatprep.subr.mxu0 0.0
  %915 = vmatpush1.xpose.msra.mxu0 0.0
  %916 = vmatprep.subr.mxu0 0.0
  %917 = vmatpush1.xpose.msra.mxu0 0.0
  %918 = vmatprep.subr.mxu0 0.0
  %919 = vmatpush1.xpose.msra.mxu0 0.0
  %920 = vmatprep.subr.mxu0 0.0
  %921 = vmatpush1.xpose.msra.mxu0 0.0
  %922 = vmatprep.subr.mxu0 0.0
  %923 = vmatpush1.xpose.msra.mxu0 0.0
  %924 = vmatprep.subr.mxu0 0.0
  %925 = vmatpush1.xpose.msra.mxu0 0.0
  %926 = vmatprep.subr.mxu0 0.0
  %927 = vmatpush1.xpose.msra.mxu0 0.0
  %928 = vmatprep.subr.mxu0 0.0
  %929 = vmatpush1.xpose.msra.mxu0 0.0
  %930 = vmatprep.subr.mxu0 0.0
  %931 = vmatpush1.xpose.msra.mxu0 0.0
  %932 = vmatprep.subr.mxu0 0.0
  %933 = vmatpush1.xpose.msra.mxu0 0.0
  %934 = vmatprep.subr.mxu0 0.0
  %935 = vmatpush1.xpose.msra.mxu0 0.0
  %936 = vmatprep.subr.mxu0 0.0
  %937 = vmatpush1.xpose.msra.mxu0 0.0
  %938 = vmatprep.subr.mxu0 0.0
  %939 = vmatpush1.xpose.msra.mxu0 0.0
  %940 = vmatprep.subr.mxu0 0.0
  %941 = vmatpush1.xpose.msra.mxu0 0.0
  %942 = vmatprep.subr.mxu0 0.0
  %943 = vmatpush1.xpose.msra.mxu0 0.0
  %944 = vmatprep.subr.mxu0 0.0
  %945 = vmatpush1.xpose.msra.mxu0 0.0
  %946 = vmatprep.subr.mxu0 0.0
  %947 = vmatpush1.xpose.msra.mxu0 0.0
  %948 = vmatprep.subr.mxu0 0.0
  %949 = vmatpush1.xpose.msra.mxu0 0.0
  %950 = vmatprep.subr.mxu0 0.0
  %951 = vmatpush1.xpose.msra.mxu0 0.0
  %952 = vmatprep.subr.mxu0 0.0
  %953 = vmatpush1.xpose.msra.mxu0 0.0
  %954 = vmatprep.subr.mxu0 0.0
  %955 = vmatpush1.xpose.msra.mxu0 0.0
  %956 = vmatprep.mubr.f32.mxu0 0.0
  %957 = vmatmul.mubr.f32.gmra.mrb[0].mxu0 %v888
  %v958 = vpop.f32.mrb[0].mxu0
  %v959 = vadd.f32 0.0, %v958
  %v960 = vpop.f32.mrb[0].mxu0
  %961 = vdwg.mxu0
  %963 = vrot.lane.b32.xlu0 %v444, 120
  %v964 = vpop.permute.xlu0 %963
  %v965 = vsel %vm733, %v444, 0
  %v967 = vsel %vm733, %v964, 0
  %969 = vmatprep.subr.mxu0 0.0
  %970 = vmatpush1.xpose.msra.mxu0 %v967
  %971 = vmatprep.subr.mxu0 0.0
  %972 = vmatpush1.xpose.msra.mxu0 0.0
  %973 = vmatprep.subr.mxu0 0.0
  %974 = vmatpush1.xpose.msra.mxu0 0.0
  %975 = vmatprep.subr.mxu0 0.0
  %976 = vmatpush1.xpose.msra.mxu0 0.0
  %977 = vmatprep.subr.mxu0 0.0
  %978 = vmatpush1.xpose.msra.mxu0 0.0
  %979 = vmatprep.subr.mxu0 0.0
  %980 = vmatpush1.xpose.msra.mxu0 0.0
  %981 = vmatprep.subr.mxu0 0.0
  %982 = vmatpush1.xpose.msra.mxu0 0.0
  %983 = vmatprep.subr.mxu0 0.0
  %984 = vmatpush1.xpose.msra.mxu0 0.0
  %985 = vmatprep.subr.mxu0 0.0
  %986 = vmatpush1.xpose.msra.mxu0 0.0
  %987 = vmatprep.subr.mxu0 0.0
  %988 = vmatpush1.xpose.msra.mxu0 0.0
  %989 = vmatprep.subr.mxu0 0.0
  %990 = vmatpush1.xpose.msra.mxu0 0.0
  %991 = vmatprep.subr.mxu0 0.0
  %992 = vmatpush1.xpose.msra.mxu0 0.0
  %993 = vmatprep.subr.mxu0 0.0
  %994 = vmatpush1.xpose.msra.mxu0 0.0
  %995 = vmatprep.subr.mxu0 0.0
  %996 = vmatpush1.xpose.msra.mxu0 0.0
  %997 = vmatprep.subr.mxu0 0.0
  %998 = vmatpush1.xpose.msra.mxu0 0.0
  %999 = vmatprep.subr.mxu0 0.0
  %1000 = vmatpush1.xpose.msra.mxu0 0.0
  %1001 = vmatprep.subr.mxu0 0.0
  %1002 = vmatpush1.xpose.msra.mxu0 0.0
  %1003 = vmatprep.subr.mxu0 0.0
  %1004 = vmatpush1.xpose.msra.mxu0 0.0
  %1005 = vmatprep.subr.mxu0 0.0
  %1006 = vmatpush1.xpose.msra.mxu0 0.0
  %1007 = vmatprep.subr.mxu0 0.0
  %1008 = vmatpush1.xpose.msra.mxu0 0.0
  %1009 = vmatprep.subr.mxu0 0.0
  %1010 = vmatpush1.xpose.msra.mxu0 0.0
  %1011 = vmatprep.subr.mxu0 0.0
  %1012 = vmatpush1.xpose.msra.mxu0 0.0
  %1013 = vmatprep.subr.mxu0 0.0
  %1014 = vmatpush1.xpose.msra.mxu0 0.0
  %1015 = vmatprep.subr.mxu0 0.0
  %1016 = vmatpush1.xpose.msra.mxu0 0.0
  %1017 = vmatprep.subr.mxu0 0.0
  %1018 = vmatpush1.xpose.msra.mxu0 0.0
  %1019 = vmatprep.subr.mxu0 0.0
  %1020 = vmatpush1.xpose.msra.mxu0 0.0
  %1021 = vmatprep.subr.mxu0 0.0
  %1022 = vmatpush1.xpose.msra.mxu0 0.0
  %1023 = vmatprep.subr.mxu0 0.0
  %1024 = vmatpush1.xpose.msra.mxu0 0.0
  %1025 = vmatprep.subr.mxu0 0.0
  %1026 = vmatpush1.xpose.msra.mxu0 0.0
  %1027 = vmatprep.subr.mxu0 0.0
  %1028 = vmatpush1.xpose.msra.mxu0 0.0
  %1029 = vmatprep.subr.mxu0 0.0
  %1030 = vmatpush1.xpose.msra.mxu0 0.0
  %1031 = vmatprep.subr.mxu0 0.0
  %1032 = vmatpush1.xpose.msra.mxu0 0.0
  %1033 = vmatprep.mubr.f32.mxu0 0.0
  %1034 = vmatmul.mubr.f32.gmra.mrb[0].mxu0 %v965
  %v1035 = vpop.f32.mrb[0].mxu0
  %v1036 = vadd.f32 0.0, %v1035
  %v1037 = vpop.f32.mrb[0].mxu0
  %1038 = vdwg.mxu0
  %1040 = vrot.lane.b32.xlu0 %v517, 120
  %v1041 = vpop.permute.xlu0 %1040
  %v1042 = vsel %vm733, %v517, 0
  %v1044 = vsel %vm733, %v1041, 0
  %1046 = vmatprep.subr.mxu0 0.0
  %1047 = vmatpush1.xpose.msra.mxu0 %v1044
  %1048 = vmatprep.subr.mxu0 0.0
  %1049 = vmatpush1.xpose.msra.mxu0 0.0
  %1050 = vmatprep.subr.mxu0 0.0
  %1051 = vmatpush1.xpose.msra.mxu0 0.0
  %1052 = vmatprep.subr.mxu0 0.0
  %1053 = vmatpush1.xpose.msra.mxu0 0.0
  %1054 = vmatprep.subr.mxu0 0.0
  %1055 = vmatpush1.xpose.msra.mxu0 0.0
  %1056 = vmatprep.subr.mxu0 0.0
  %1057 = vmatpush1.xpose.msra.mxu0 0.0
  %1058 = vmatprep.subr.mxu0 0.0
  %1059 = vmatpush1.xpose.msra.mxu0 0.0
  %1060 = vmatprep.subr.mxu0 0.0
  %1061 = vmatpush1.xpose.msra.mxu0 0.0
  %1062 = vmatprep.subr.mxu0 0.0
  %1063 = vmatpush1.xpose.msra.mxu0 0.0
  %1064 = vmatprep.subr.mxu0 0.0
  %1065 = vmatpush1.xpose.msra.mxu0 0.0
  %1066 = vmatprep.subr.mxu0 0.0
  %1067 = vmatpush1.xpose.msra.mxu0 0.0
  %1068 = vmatprep.subr.mxu0 0.0
  %1069 = vmatpush1.xpose.msra.mxu0 0.0
  %1070 = vmatprep.subr.mxu0 0.0
  %1071 = vmatpush1.xpose.msra.mxu0 0.0
  %1072 = vmatprep.subr.mxu0 0.0
  %1073 = vmatpush1.xpose.msra.mxu0 0.0
  %1074 = vmatprep.subr.mxu0 0.0
  %1075 = vmatpush1.xpose.msra.mxu0 0.0
  %1076 = vmatprep.subr.mxu0 0.0
  %1077 = vmatpush1.xpose.msra.mxu0 0.0
  %1078 = vmatprep.subr.mxu0 0.0
  %1079 = vmatpush1.xpose.msra.mxu0 0.0
  %1080 = vmatprep.subr.mxu0 0.0
  %1081 = vmatpush1.xpose.msra.mxu0 0.0
  %1082 = vmatprep.subr.mxu0 0.0
  %1083 = vmatpush1.xpose.msra.mxu0 0.0
  %1084 = vmatprep.subr.mxu0 0.0
  %1085 = vmatpush1.xpose.msra.mxu0 0.0
  %1086 = vmatprep.subr.mxu0 0.0
  %1087 = vmatpush1.xpose.msra.mxu0 0.0
  %1088 = vmatprep.subr.mxu0 0.0
  %1089 = vmatpush1.xpose.msra.mxu0 0.0
  %1090 = vmatprep.subr.mxu0 0.0
  %1091 = vmatpush1.xpose.msra.mxu0 0.0
  %1092 = vmatprep.subr.mxu0 0.0
  %1093 = vmatpush1.xpose.msra.mxu0 0.0
  %1094 = vmatprep.subr.mxu0 0.0
  %1095 = vmatpush1.xpose.msra.mxu0 0.0
  %1096 = vmatprep.subr.mxu0 0.0
  %1097 = vmatpush1.xpose.msra.mxu0 0.0
  %1098 = vmatprep.subr.mxu0 0.0
  %1099 = vmatpush1.xpose.msra.mxu0 0.0
  %1100 = vmatprep.subr.mxu0 0.0
  %1101 = vmatpush1.xpose.msra.mxu0 0.0
  %1102 = vmatprep.subr.mxu0 0.0
  %1103 = vmatpush1.xpose.msra.mxu0 0.0
  %1104 = vmatprep.subr.mxu0 0.0
  %1105 = vmatpush1.xpose.msra.mxu0 0.0
  %1106 = vmatprep.subr.mxu0 0.0
  %1107 = vmatpush1.xpose.msra.mxu0 0.0
  %1108 = vmatprep.subr.mxu0 0.0
  %1109 = vmatpush1.xpose.msra.mxu0 0.0
  %1110 = vmatprep.mubr.f32.mxu0 0.0
  %1111 = vmatmul.mubr.f32.gmra.mrb[0].mxu0 %v1042
  %v1112 = vpop.f32.mrb[0].mxu0
  %v1113 = vadd.f32 0.0, %v1112
  %v1114 = vpop.f32.mrb[0].mxu0
  %1115 = vdwg.mxu0
  %1117 = vrot.lane.b32.xlu0 %v587, 120
  %v1118 = vpop.permute.xlu0 %1117
  %v1119 = vsel %vm733, %v587, 0
  %v1121 = vsel %vm733, %v1118, 0
  %1123 = vmatprep.subr.mxu0 0.0
  %1124 = vmatpush1.xpose.msra.mxu0 %v1121
  %1125 = vmatprep.subr.mxu0 0.0
  %1126 = vmatpush1.xpose.msra.mxu0 0.0
  %1127 = vmatprep.subr.mxu0 0.0
  %1128 = vmatpush1.xpose.msra.mxu0 0.0
  %1129 = vmatprep.subr.mxu0 0.0
  %1130 = vmatpush1.xpose.msra.mxu0 0.0
  %1131 = vmatprep.subr.mxu0 0.0
  %1132 = vmatpush1.xpose.msra.mxu0 0.0
  %1133 = vmatprep.subr.mxu0 0.0
  %1134 = vmatpush1.xpose.msra.mxu0 0.0
  %1135 = vmatprep.subr.mxu0 0.0
  %1136 = vmatpush1.xpose.msra.mxu0 0.0
  %1137 = vmatprep.subr.mxu0 0.0
  %1138 = vmatpush1.xpose.msra.mxu0 0.0
  %1139 = vmatprep.subr.mxu0 0.0
  %1140 = vmatpush1.xpose.msra.mxu0 0.0
  %1141 = vmatprep.subr.mxu0 0.0
  %1142 = vmatpush1.xpose.msra.mxu0 0.0
  %1143 = vmatprep.subr.mxu0 0.0
  %1144 = vmatpush1.xpose.msra.mxu0 0.0
  %1145 = vmatprep.subr.mxu0 0.0
  %1146 = vmatpush1.xpose.msra.mxu0 0.0
  %1147 = vmatprep.subr.mxu0 0.0
  %1148 = vmatpush1.xpose.msra.mxu0 0.0
  %1149 = vmatprep.subr.mxu0 0.0
  %1150 = vmatpush1.xpose.msra.mxu0 0.0
  %1151 = vmatprep.subr.mxu0 0.0
  %1152 = vmatpush1.xpose.msra.mxu0 0.0
  %1153 = vmatprep.subr.mxu0 0.0
  %1154 = vmatpush1.xpose.msra.mxu0 0.0
  %1155 = vmatprep.subr.mxu0 0.0
  %1156 = vmatpush1.xpose.msra.mxu0 0.0
  %1157 = vmatprep.subr.mxu0 0.0
  %1158 = vmatpush1.xpose.msra.mxu0 0.0
  %1159 = vmatprep.subr.mxu0 0.0
  %1160 = vmatpush1.xpose.msra.mxu0 0.0
  %1161 = vmatprep.subr.mxu0 0.0
  %1162 = vmatpush1.xpose.msra.mxu0 0.0
  %1163 = vmatprep.subr.mxu0 0.0
  %1164 = vmatpush1.xpose.msra.mxu0 0.0
  %1165 = vmatprep.subr.mxu0 0.0
  %1166 = vmatpush1.xpose.msra.mxu0 0.0
  %1167 = vmatprep.subr.mxu0 0.0
  %1168 = vmatpush1.xpose.msra.mxu0 0.0
  %1169 = vmatprep.subr.mxu0 0.0
  %1170 = vmatpush1.xpose.msra.mxu0 0.0
  %1171 = vmatprep.subr.mxu0 0.0
  %1172 = vmatpush1.xpose.msra.mxu0 0.0
  %1173 = vmatprep.subr.mxu0 0.0
  %1174 = vmatpush1.xpose.msra.mxu0 0.0
  %1175 = vmatprep.subr.mxu0 0.0
  %1176 = vmatpush1.xpose.msra.mxu0 0.0
  %1177 = vmatprep.subr.mxu0 0.0
  %1178 = vmatpush1.xpose.msra.mxu0 0.0
  %1179 = vmatprep.subr.mxu0 0.0
  %1180 = vmatpush1.xpose.msra.mxu0 0.0
  %1181 = vmatprep.subr.mxu0 0.0
  %1182 = vmatpush1.xpose.msra.mxu0 0.0
  %1183 = vmatprep.subr.mxu0 0.0
  %1184 = vmatpush1.xpose.msra.mxu0 0.0
  %1185 = vmatprep.subr.mxu0 0.0
  %1186 = vmatpush1.xpose.msra.mxu0 0.0
  %1187 = vmatprep.mubr.f32.mxu0 0.0
  %1188 = vmatmul.mubr.f32.gmra.mrb[0].mxu0 %v1119
  %v1189 = vpop.f32.mrb[0].mxu0
  %v1190 = vadd.f32 0.0, %v1189
  %v1191 = vpop.f32.mrb[0].mxu0
  %1192 = vdwg.mxu0
  %1194 = vrot.lane.b32.xlu0 %v657, 120
  %v1195 = vpop.permute.xlu0 %1194
  %v1196 = vsel %vm733, %v657, 0
  %v1198 = vsel %vm733, %v1195, 0
  %1200 = vmatprep.subr.mxu0 0.0
  %1201 = vmatpush1.xpose.msra.mxu0 %v1198
  %1202 = vmatprep.subr.mxu0 0.0
  %1203 = vmatpush1.xpose.msra.mxu0 0.0
  %1204 = vmatprep.subr.mxu0 0.0
  %1205 = vmatpush1.xpose.msra.mxu0 0.0
  %1206 = vmatprep.subr.mxu0 0.0
  %1207 = vmatpush1.xpose.msra.mxu0 0.0
  %1208 = vmatprep.subr.mxu0 0.0
  %1209 = vmatpush1.xpose.msra.mxu0 0.0
  %1210 = vmatprep.subr.mxu0 0.0
  %1211 = vmatpush1.xpose.msra.mxu0 0.0
  %1212 = vmatprep.subr.mxu0 0.0
  %1213 = vmatpush1.xpose.msra.mxu0 0.0
  %1214 = vmatprep.subr.mxu0 0.0
  %1215 = vmatpush1.xpose.msra.mxu0 0.0
  %1216 = vmatprep.subr.mxu0 0.0
  %1217 = vmatpush1.xpose.msra.mxu0 0.0
  %1218 = vmatprep.subr.mxu0 0.0
  %1219 = vmatpush1.xpose.msra.mxu0 0.0
  %1220 = vmatprep.subr.mxu0 0.0
  %1221 = vmatpush1.xpose.msra.mxu0 0.0
  %1222 = vmatprep.subr.mxu0 0.0
  %1223 = vmatpush1.xpose.msra.mxu0 0.0
  %1224 = vmatprep.subr.mxu0 0.0
  %1225 = vmatpush1.xpose.msra.mxu0 0.0
  %1226 = vmatprep.subr.mxu0 0.0
  %1227 = vmatpush1.xpose.msra.mxu0 0.0
  %1228 = vmatprep.subr.mxu0 0.0
  %1229 = vmatpush1.xpose.msra.mxu0 0.0
  %1230 = vmatprep.subr.mxu0 0.0
  %1231 = vmatpush1.xpose.msra.mxu0 0.0
  %1232 = vmatprep.subr.mxu0 0.0
  %1233 = vmatpush1.xpose.msra.mxu0 0.0
  %1234 = vmatprep.subr.mxu0 0.0
  %1235 = vmatpush1.xpose.msra.mxu0 0.0
  %1236 = vmatprep.subr.mxu0 0.0
  %1237 = vmatpush1.xpose.msra.mxu0 0.0
  %1238 = vmatprep.subr.mxu0 0.0
  %1239 = vmatpush1.xpose.msra.mxu0 0.0
  %1240 = vmatprep.subr.mxu0 0.0
  %1241 = vmatpush1.xpose.msra.mxu0 0.0
  %1242 = vmatprep.subr.mxu0 0.0
  %1243 = vmatpush1.xpose.msra.mxu0 0.0
  %1244 = vmatprep.subr.mxu0 0.0
  %1245 = vmatpush1.xpose.msra.mxu0 0.0
  %1246 = vmatprep.subr.mxu0 0.0
  %1247 = vmatpush1.xpose.msra.mxu0 0.0
  %1248 = vmatprep.subr.mxu0 0.0
  %1249 = vmatpush1.xpose.msra.mxu0 0.0
  %1250 = vmatprep.subr.mxu0 0.0
  %1251 = vmatpush1.xpose.msra.mxu0 0.0
  %1252 = vmatprep.subr.mxu0 0.0
  %1253 = vmatpush1.xpose.msra.mxu0 0.0
  %1254 = vmatprep.subr.mxu0 0.0
  %1255 = vmatpush1.xpose.msra.mxu0 0.0
  %1256 = vmatprep.subr.mxu0 0.0
  %1257 = vmatpush1.xpose.msra.mxu0 0.0
  %1258 = vmatprep.subr.mxu0 0.0
  %1259 = vmatpush1.xpose.msra.mxu0 0.0
  %1260 = vmatprep.subr.mxu0 0.0
  %1261 = vmatpush1.xpose.msra.mxu0 0.0
  %1262 = vmatprep.subr.mxu0 0.0
  %1263 = vmatpush1.xpose.msra.mxu0 0.0
  %1264 = vmatprep.mubr.f32.mxu0 0.0
  %1265 = vmatmul.mubr.f32.gmra.mrb[0].mxu0 %v1196
  %v1266 = vpop.f32.mrb[0].mxu0
  %v1267 = vadd.f32 0.0, %v1266
  %v1268 = vpop.f32.mrb[0].mxu0
  %1269 = vdwg.mxu0
  %1271 = vrot.lane.b32.xlu0 %v727, 120
  %v1272 = vpop.permute.xlu0 %1271
  %v1273 = vsel %vm733, %v727, 0
  %v1275 = vsel %vm733, %v1272, 0
  %1277 = vmatprep.subr.mxu0 0.0
  %1278 = vmatpush1.xpose.msra.mxu0 %v1275
  %1279 = vmatprep.subr.mxu0 0.0
  %1280 = vmatpush1.xpose.msra.mxu0 0.0
  %1281 = vmatprep.subr.mxu0 0.0
  %1282 = vmatpush1.xpose.msra.mxu0 0.0
  %1283 = vmatprep.subr.mxu0 0.0
  %1284 = vmatpush1.xpose.msra.mxu0 0.0
  %1285 = vmatprep.subr.mxu0 0.0
  %1286 = vmatpush1.xpose.msra.mxu0 0.0
  %1287 = vmatprep.subr.mxu0 0.0
  %1288 = vmatpush1.xpose.msra.mxu0 0.0
  %1289 = vmatprep.subr.mxu0 0.0
  %1290 = vmatpush1.xpose.msra.mxu0 0.0
  %1291 = vmatprep.subr.mxu0 0.0
  %1292 = vmatpush1.xpose.msra.mxu0 0.0
  %1293 = vmatprep.subr.mxu0 0.0
  %1294 = vmatpush1.xpose.msra.mxu0 0.0
  %1295 = vmatprep.subr.mxu0 0.0
  %1296 = vmatpush1.xpose.msra.mxu0 0.0
  %1297 = vmatprep.subr.mxu0 0.0
  %1298 = vmatpush1.xpose.msra.mxu0 0.0
  %1299 = vmatprep.subr.mxu0 0.0
  %1300 = vmatpush1.xpose.msra.mxu0 0.0
  %1301 = vmatprep.subr.mxu0 0.0
  %1302 = vmatpush1.xpose.msra.mxu0 0.0
  %1303 = vmatprep.subr.mxu0 0.0
  %1304 = vmatpush1.xpose.msra.mxu0 0.0
  %1305 = vmatprep.subr.mxu0 0.0
  %1306 = vmatpush1.xpose.msra.mxu0 0.0
  %1307 = vmatprep.subr.mxu0 0.0
  %1308 = vmatpush1.xpose.msra.mxu0 0.0
  %1309 = vmatprep.subr.mxu0 0.0
  %1310 = vmatpush1.xpose.msra.mxu0 0.0
  %1311 = vmatprep.subr.mxu0 0.0
  %1312 = vmatpush1.xpose.msra.mxu0 0.0
  %1313 = vmatprep.subr.mxu0 0.0
  %1314 = vmatpush1.xpose.msra.mxu0 0.0
  %1315 = vmatprep.subr.mxu0 0.0
  %1316 = vmatpush1.xpose.msra.mxu0 0.0
  %1317 = vmatprep.subr.mxu0 0.0
  %1318 = vmatpush1.xpose.msra.mxu0 0.0
  %1319 = vmatprep.subr.mxu0 0.0
  %1320 = vmatpush1.xpose.msra.mxu0 0.0
  %1321 = vmatprep.subr.mxu0 0.0
  %1322 = vmatpush1.xpose.msra.mxu0 0.0
  %1323 = vmatprep.subr.mxu0 0.0
  %1324 = vmatpush1.xpose.msra.mxu0 0.0
  %1325 = vmatprep.subr.mxu0 0.0
  %1326 = vmatpush1.xpose.msra.mxu0 0.0
  %1327 = vmatprep.subr.mxu0 0.0
  %1328 = vmatpush1.xpose.msra.mxu0 0.0
  %1329 = vmatprep.subr.mxu0 0.0
  %1330 = vmatpush1.xpose.msra.mxu0 0.0
  %1331 = vmatprep.subr.mxu0 0.0
  %1332 = vmatpush1.xpose.msra.mxu0 0.0
  %1333 = vmatprep.subr.mxu0 0.0
  %1334 = vmatpush1.xpose.msra.mxu0 0.0
  %1335 = vmatprep.subr.mxu0 0.0
  %1336 = vmatpush1.xpose.msra.mxu0 0.0
  %1337 = vmatprep.subr.mxu0 0.0
  %1338 = vmatpush1.xpose.msra.mxu0 0.0
  %1339 = vmatprep.subr.mxu0 0.0
  %1340 = vmatpush1.xpose.msra.mxu0 0.0
  %1341 = vmatprep.mubr.f32.mxu0 0.0
  %1342 = vmatmul.mubr.f32.gmra.mrb[0].mxu0 %v1273
  %v1343 = vpop.f32.mrb[0].mxu0
  %v1344 = vadd.f32 0.0, %v1343
  %v1345 = vpop.f32.mrb[0].mxu0
  %1346 = vdwg.mxu0
  %v1347 = vmul.f32 %v805, 1.442695
  %v1348 = vpow.pop %v1347
  %v1349 = vmul.f32 %v882, 1.442695
  %v1350 = vpow.pop %v1349
  %v1351 = vmul.f32 %v959, 1.442695
  %v1352 = vpow.pop %v1351
  %v1353 = vmul.f32 %v1036, 1.442695
  %v1354 = vpow.pop %v1353
  %v1355 = vmul.f32 %v1113, 1.442695
  %v1356 = vpow.pop %v1355
  %v1357 = vmul.f32 %v1190, 1.442695
  %v1358 = vpow.pop %v1357
  %v1359 = vmul.f32 %v1267, 1.442695
  %v1360 = vpow.pop %v1359
  %v1361 = vmul.f32 %v1344, 1.442695
  %v1362 = vpow.pop %v1361
  %v1363 = vsel %vm733, %v1348, 0.0
  %1364 = vadd.xlane.f32.xlu0 %v1363
  %v1365 = vpop.xlane.xlu0 %1364
  %v1366 = vsel %vm733, %v1350, 0.0
  %1367 = vadd.xlane.f32.xlu0 %v1366
  %v1368 = vpop.xlane.xlu0 %1367
  %v1369 = vsel %vm733, %v1352, 0.0
  %1370 = vadd.xlane.f32.xlu0 %v1369
  %v1371 = vpop.xlane.xlu0 %1370
  %v1372 = vsel %vm733, %v1354, 0.0
  %1373 = vadd.xlane.f32.xlu0 %v1372
  %v1374 = vpop.xlane.xlu0 %1373
  %v1375 = vsel %vm733, %v1356, 0.0
  %1376 = vadd.xlane.f32.xlu0 %v1375
  %v1377 = vpop.xlane.xlu0 %1376
  %v1378 = vsel %vm733, %v1358, 0.0
  %1379 = vadd.xlane.f32.xlu0 %v1378
  %v1380 = vpop.xlane.xlu0 %1379
  %v1381 = vsel %vm733, %v1360, 0.0
  %1382 = vadd.xlane.f32.xlu0 %v1381
  %v1383 = vpop.xlane.xlu0 %1382
  %v1384 = vsel %vm733, %v1362, 0.0
  %1385 = vadd.xlane.f32.xlu0 %v1384
  %v1386 = vpop.xlane.xlu0 %1385
  %v1387 = vrcp.pop %v1365
  %v1388 = vrcp.pop %v1368
  %v1389 = vrcp.pop %v1371
  %v1390 = vrcp.pop %v1374
  %v1391 = vrcp.pop %v1377
  %v1392 = vrcp.pop %v1380
  %v1393 = vrcp.pop %v1383
  %v1394 = vrcp.pop %v1386
  %v1395 = vmul.f32 %v1348, %v1387
  %v1396 = vmul.f32 %v1350, %v1388
  %v1397 = vmul.f32 %v1352, %v1389
  %v1398 = vmul.f32 %v1354, %v1390
  %v1399 = vmul.f32 %v1356, %v1391
  %v1400 = vmul.f32 %v1358, %v1392
  %v1401 = vmul.f32 %v1360, %v1393
  %v1402 = vmul.f32 %v1362, %v1394
  %1403 = vrot.lane.b32.xlu0 %v234, 112
  %v1404 = vpop.permute.xlu0 %1403
  %v1407 = vsel %vm733, %v1395, 0
  %1409 = vmatprep.subr.mxu0 0.0
  %1410 = vmatpush1.msra.mxu0 %v1404
  %1411 = vmatprep.subr.mxu0 0.0
  %1412 = vmatpush1.msra.mxu0 0.0
  %1413 = vmatprep.subr.mxu0 0.0
  %1414 = vmatpush1.msra.mxu0 0.0
  %1415 = vmatprep.subr.mxu0 0.0
  %1416 = vmatpush1.msra.mxu0 0.0
  %1417 = vmatprep.subr.mxu0 0.0
  %1418 = vmatpush1.msra.mxu0 0.0
  %1419 = vmatprep.subr.mxu0 0.0
  %1420 = vmatpush1.msra.mxu0 0.0
  %1421 = vmatprep.subr.mxu0 0.0
  %1422 = vmatpush1.msra.mxu0 0.0
  %1423 = vmatprep.subr.mxu0 0.0
  %1424 = vmatpush1.msra.mxu0 0.0
  %1425 = vmatprep.subr.mxu0 0.0
  %1426 = vmatpush1.msra.mxu0 0.0
  %1427 = vmatprep.subr.mxu0 0.0
  %1428 = vmatpush1.msra.mxu0 0.0
  %1429 = vmatprep.subr.mxu0 0.0
  %1430 = vmatpush1.msra.mxu0 0.0
  %1431 = vmatprep.subr.mxu0 0.0
  %1432 = vmatpush1.msra.mxu0 0.0
  %1433 = vmatprep.subr.mxu0 0.0
  %1434 = vmatpush1.msra.mxu0 0.0
  %1435 = vmatprep.subr.mxu0 0.0
  %1436 = vmatpush1.msra.mxu0 0.0
  %1437 = vmatprep.subr.mxu0 0.0
  %1438 = vmatpush1.msra.mxu0 0.0
  %1439 = vmatprep.subr.mxu0 0.0
  %1440 = vmatpush1.msra.mxu0 0.0
  %1441 = vmatprep.subr.mxu0 0.0
  %1442 = vmatpush1.msra.mxu0 0.0
  %1443 = vmatprep.subr.mxu0 0.0
  %1444 = vmatpush1.msra.mxu0 0.0
  %1445 = vmatprep.subr.mxu0 0.0
  %1446 = vmatpush1.msra.mxu0 0.0
  %1447 = vmatprep.subr.mxu0 0.0
  %1448 = vmatpush1.msra.mxu0 0.0
  %1449 = vmatprep.subr.mxu0 0.0
  %1450 = vmatpush1.msra.mxu0 0.0
  %1451 = vmatprep.subr.mxu0 0.0
  %1452 = vmatpush1.msra.mxu0 0.0
  %1453 = vmatprep.subr.mxu0 0.0
  %1454 = vmatpush1.msra.mxu0 0.0
  %1455 = vmatprep.subr.mxu0 0.0
  %1456 = vmatpush1.msra.mxu0 0.0
  %1457 = vmatprep.subr.mxu0 0.0
  %1458 = vmatpush1.msra.mxu0 0.0
  %1459 = vmatprep.subr.mxu0 0.0
  %1460 = vmatpush1.msra.mxu0 0.0
  %1461 = vmatprep.subr.mxu0 0.0
  %1462 = vmatpush1.msra.mxu0 0.0
  %1463 = vmatprep.subr.mxu0 0.0
  %1464 = vmatpush1.msra.mxu0 0.0
  %1465 = vmatprep.subr.mxu0 0.0
  %1466 = vmatpush1.msra.mxu0 0.0
  %1467 = vmatprep.subr.mxu0 0.0
  %1468 = vmatpush1.msra.mxu0 0.0
  %1469 = vmatprep.subr.mxu0 0.0
  %1470 = vmatpush1.msra.mxu0 0.0
  %1471 = vmatprep.subr.mxu0 0.0
  %1472 = vmatpush1.msra.mxu0 0.0
  %1473 = vmatprep.mubr.f32.mxu0 0.0
  %1474 = vmatmul.mubr.f32.gmra.mrb[0].mxu0 %v1407
  %v1475 = vpop.f32.mrb[0].mxu0
  %v1476 = vadd.f32 0.0, %v1475
  %v1477 = vpop.f32.mrb[0].mxu0
  %1478 = vdwg.mxu0
  %1479 = vrot.lane.b32.xlu0 %v304, 112
  %v1480 = vpop.permute.xlu0 %1479
  %v1483 = vsel %vm733, %v1396, 0
  %1485 = vmatprep.subr.mxu0 0.0
  %1486 = vmatpush1.msra.mxu0 %v1480
  %1487 = vmatprep.subr.mxu0 0.0
  %1488 = vmatpush1.msra.mxu0 0.0
  %1489 = vmatprep.subr.mxu0 0.0
  %1490 = vmatpush1.msra.mxu0 0.0
  %1491 = vmatprep.subr.mxu0 0.0
  %1492 = vmatpush1.msra.mxu0 0.0
  %1493 = vmatprep.subr.mxu0 0.0
  %1494 = vmatpush1.msra.mxu0 0.0
  %1495 = vmatprep.subr.mxu0 0.0
  %1496 = vmatpush1.msra.mxu0 0.0
  %1497 = vmatprep.subr.mxu0 0.0
  %1498 = vmatpush1.msra.mxu0 0.0
  %1499 = vmatprep.subr.mxu0 0.0
  %1500 = vmatpush1.msra.mxu0 0.0
  %1501 = vmatprep.subr.mxu0 0.0
  %1502 = vmatpush1.msra.mxu0 0.0
  %1503 = vmatprep.subr.mxu0 0.0
  %1504 = vmatpush1.msra.mxu0 0.0
  %1505 = vmatprep.subr.mxu0 0.0
  %1506 = vmatpush1.msra.mxu0 0.0
  %1507 = vmatprep.subr.mxu0 0.0
  %1508 = vmatpush1.msra.mxu0 0.0
  %1509 = vmatprep.subr.mxu0 0.0
  %1510 = vmatpush1.msra.mxu0 0.0
  %1511 = vmatprep.subr.mxu0 0.0
  %1512 = vmatpush1.msra.mxu0 0.0
  %1513 = vmatprep.subr.mxu0 0.0
  %1514 = vmatpush1.msra.mxu0 0.0
  %1515 = vmatprep.subr.mxu0 0.0
  %1516 = vmatpush1.msra.mxu0 0.0
  %1517 = vmatprep.subr.mxu0 0.0
  %1518 = vmatpush1.msra.mxu0 0.0
  %1519 = vmatprep.subr.mxu0 0.0
  %1520 = vmatpush1.msra.mxu0 0.0
  %1521 = vmatprep.subr.mxu0 0.0
  %1522 = vmatpush1.msra.mxu0 0.0
  %1523 = vmatprep.subr.mxu0 0.0
  %1524 = vmatpush1.msra.mxu0 0.0
  %1525 = vmatprep.subr.mxu0 0.0
  %1526 = vmatpush1.msra.mxu0 0.0
  %1527 = vmatprep.subr.mxu0 0.0
  %1528 = vmatpush1.msra.mxu0 0.0
  %1529 = vmatprep.subr.mxu0 0.0
  %1530 = vmatpush1.msra.mxu0 0.0
  %1531 = vmatprep.subr.mxu0 0.0
  %1532 = vmatpush1.msra.mxu0 0.0
  %1533 = vmatprep.subr.mxu0 0.0
  %1534 = vmatpush1.msra.mxu0 0.0
  %1535 = vmatprep.subr.mxu0 0.0
  %1536 = vmatpush1.msra.mxu0 0.0
  %1537 = vmatprep.subr.mxu0 0.0
  %1538 = vmatpush1.msra.mxu0 0.0
  %1539 = vmatprep.subr.mxu0 0.0
  %1540 = vmatpush1.msra.mxu0 0.0
  %1541 = vmatprep.subr.mxu0 0.0
  %1542 = vmatpush1.msra.mxu0 0.0
  %1543 = vmatprep.subr.mxu0 0.0
  %1544 = vmatpush1.msra.mxu0 0.0
  %1545 = vmatprep.subr.mxu0 0.0
  %1546 = vmatpush1.msra.mxu0 0.0
  %1547 = vmatprep.subr.mxu0 0.0
  %1548 = vmatpush1.msra.mxu0 0.0
  %1549 = vmatprep.mubr.f32.mxu0 0.0
  %1550 = vmatmul.mubr.f32.gmra.mrb[0].mxu0 %v1483
  %v1551 = vpop.f32.mrb[0].mxu0
  %v1552 = vadd.f32 0.0, %v1551
  %v1553 = vpop.f32.mrb[0].mxu0
  %1554 = vdwg.mxu0
  %1555 = vrot.lane.b32.xlu0 %v374, 112
  %v1556 = vpop.permute.xlu0 %1555
  %v1559 = vsel %vm733, %v1397, 0
  %1561 = vmatprep.subr.mxu0 0.0
  %1562 = vmatpush1.msra.mxu0 %v1556
  %1563 = vmatprep.subr.mxu0 0.0
  %1564 = vmatpush1.msra.mxu0 0.0
  %1565 = vmatprep.subr.mxu0 0.0
  %1566 = vmatpush1.msra.mxu0 0.0
  %1567 = vmatprep.subr.mxu0 0.0
  %1568 = vmatpush1.msra.mxu0 0.0
  %1569 = vmatprep.subr.mxu0 0.0
  %1570 = vmatpush1.msra.mxu0 0.0
  %1571 = vmatprep.subr.mxu0 0.0
  %1572 = vmatpush1.msra.mxu0 0.0
  %1573 = vmatprep.subr.mxu0 0.0
  %1574 = vmatpush1.msra.mxu0 0.0
  %1575 = vmatprep.subr.mxu0 0.0
  %1576 = vmatpush1.msra.mxu0 0.0
  %1577 = vmatprep.subr.mxu0 0.0
  %1578 = vmatpush1.msra.mxu0 0.0
  %1579 = vmatprep.subr.mxu0 0.0
  %1580 = vmatpush1.msra.mxu0 0.0
  %1581 = vmatprep.subr.mxu0 0.0
  %1582 = vmatpush1.msra.mxu0 0.0
  %1583 = vmatprep.subr.mxu0 0.0
  %1584 = vmatpush1.msra.mxu0 0.0
  %1585 = vmatprep.subr.mxu0 0.0
  %1586 = vmatpush1.msra.mxu0 0.0
  %1587 = vmatprep.subr.mxu0 0.0
  %1588 = vmatpush1.msra.mxu0 0.0
  %1589 = vmatprep.subr.mxu0 0.0
  %1590 = vmatpush1.msra.mxu0 0.0
  %1591 = vmatprep.subr.mxu0 0.0
  %1592 = vmatpush1.msra.mxu0 0.0
  %1593 = vmatprep.subr.mxu0 0.0
  %1594 = vmatpush1.msra.mxu0 0.0
  %1595 = vmatprep.subr.mxu0 0.0
  %1596 = vmatpush1.msra.mxu0 0.0
  %1597 = vmatprep.subr.mxu0 0.0
  %1598 = vmatpush1.msra.mxu0 0.0
  %1599 = vmatprep.subr.mxu0 0.0
  %1600 = vmatpush1.msra.mxu0 0.0
  %1601 = vmatprep.subr.mxu0 0.0
  %1602 = vmatpush1.msra.mxu0 0.0
  %1603 = vmatprep.subr.mxu0 0.0
  %1604 = vmatpush1.msra.mxu0 0.0
  %1605 = vmatprep.subr.mxu0 0.0
  %1606 = vmatpush1.msra.mxu0 0.0
  %1607 = vmatprep.subr.mxu0 0.0
  %1608 = vmatpush1.msra.mxu0 0.0
  %1609 = vmatprep.subr.mxu0 0.0
  %1610 = vmatpush1.msra.mxu0 0.0
  %1611 = vmatprep.subr.mxu0 0.0
  %1612 = vmatpush1.msra.mxu0 0.0
  %1613 = vmatprep.subr.mxu0 0.0
  %1614 = vmatpush1.msra.mxu0 0.0
  %1615 = vmatprep.subr.mxu0 0.0
  %1616 = vmatpush1.msra.mxu0 0.0
  %1617 = vmatprep.subr.mxu0 0.0
  %1618 = vmatpush1.msra.mxu0 0.0
  %1619 = vmatprep.subr.mxu0 0.0
  %1620 = vmatpush1.msra.mxu0 0.0
  %1621 = vmatprep.subr.mxu0 0.0
  %1622 = vmatpush1.msra.mxu0 0.0
  %1623 = vmatprep.subr.mxu0 0.0
  %1624 = vmatpush1.msra.mxu0 0.0
  %1625 = vmatprep.mubr.f32.mxu0 0.0
  %1626 = vmatmul.mubr.f32.gmra.mrb[0].mxu0 %v1559
  %v1627 = vpop.f32.mrb[0].mxu0
  %v1628 = vadd.f32 0.0, %v1627
  %v1629 = vpop.f32.mrb[0].mxu0
  %1630 = vdwg.mxu0
  %1631 = vrot.lane.b32.xlu0 %v444, 112
  %v1632 = vpop.permute.xlu0 %1631
  %v1635 = vsel %vm733, %v1398, 0
  %1637 = vmatprep.subr.mxu0 0.0
  %1638 = vmatpush1.msra.mxu0 %v1632
  %1639 = vmatprep.subr.mxu0 0.0
  %1640 = vmatpush1.msra.mxu0 0.0
  %1641 = vmatprep.subr.mxu0 0.0
  %1642 = vmatpush1.msra.mxu0 0.0
  %1643 = vmatprep.subr.mxu0 0.0
  %1644 = vmatpush1.msra.mxu0 0.0
  %1645 = vmatprep.subr.mxu0 0.0
  %1646 = vmatpush1.msra.mxu0 0.0
  %1647 = vmatprep.subr.mxu0 0.0
  %1648 = vmatpush1.msra.mxu0 0.0
  %1649 = vmatprep.subr.mxu0 0.0
  %1650 = vmatpush1.msra.mxu0 0.0
  %1651 = vmatprep.subr.mxu0 0.0
  %1652 = vmatpush1.msra.mxu0 0.0
  %1653 = vmatprep.subr.mxu0 0.0
  %1654 = vmatpush1.msra.mxu0 0.0
  %1655 = vmatprep.subr.mxu0 0.0
  %1656 = vmatpush1.msra.mxu0 0.0
  %1657 = vmatprep.subr.mxu0 0.0
  %1658 = vmatpush1.msra.mxu0 0.0
  %1659 = vmatprep.subr.mxu0 0.0
  %1660 = vmatpush1.msra.mxu0 0.0
  %1661 = vmatprep.subr.mxu0 0.0
  %1662 = vmatpush1.msra.mxu0 0.0
  %1663 = vmatprep.subr.mxu0 0.0
  %1664 = vmatpush1.msra.mxu0 0.0
  %1665 = vmatprep.subr.mxu0 0.0
  %1666 = vmatpush1.msra.mxu0 0.0
  %1667 = vmatprep.subr.mxu0 0.0
  %1668 = vmatpush1.msra.mxu0 0.0
  %1669 = vmatprep.subr.mxu0 0.0
  %1670 = vmatpush1.msra.mxu0 0.0
  %1671 = vmatprep.subr.mxu0 0.0
  %1672 = vmatpush1.msra.mxu0 0.0
  %1673 = vmatprep.subr.mxu0 0.0
  %1674 = vmatpush1.msra.mxu0 0.0
  %1675 = vmatprep.subr.mxu0 0.0
  %1676 = vmatpush1.msra.mxu0 0.0
  %1677 = vmatprep.subr.mxu0 0.0
  %1678 = vmatpush1.msra.mxu0 0.0
  %1679 = vmatprep.subr.mxu0 0.0
  %1680 = vmatpush1.msra.mxu0 0.0
  %1681 = vmatprep.subr.mxu0 0.0
  %1682 = vmatpush1.msra.mxu0 0.0
  %1683 = vmatprep.subr.mxu0 0.0
  %1684 = vmatpush1.msra.mxu0 0.0
  %1685 = vmatprep.subr.mxu0 0.0
  %1686 = vmatpush1.msra.mxu0 0.0
  %1687 = vmatprep.subr.mxu0 0.0
  %1688 = vmatpush1.msra.mxu0 0.0
  %1689 = vmatprep.subr.mxu0 0.0
  %1690 = vmatpush1.msra.mxu0 0.0
  %1691 = vmatprep.subr.mxu0 0.0
  %1692 = vmatpush1.msra.mxu0 0.0
  %1693 = vmatprep.subr.mxu0 0.0
  %1694 = vmatpush1.msra.mxu0 0.0
  %1695 = vmatprep.subr.mxu0 0.0
  %1696 = vmatpush1.msra.mxu0 0.0
  %1697 = vmatprep.subr.mxu0 0.0
  %1698 = vmatpush1.msra.mxu0 0.0
  %1699 = vmatprep.subr.mxu0 0.0
  %1700 = vmatpush1.msra.mxu0 0.0
  %1701 = vmatprep.mubr.f32.mxu0 0.0
  %1702 = vmatmul.mubr.f32.gmra.mrb[0].mxu0 %v1635
  %v1703 = vpop.f32.mrb[0].mxu0
  %v1704 = vadd.f32 0.0, %v1703
  %v1705 = vpop.f32.mrb[0].mxu0
  %1706 = vdwg.mxu0
  %1707 = vrot.lane.b32.xlu0 %v517, 112
  %v1708 = vpop.permute.xlu0 %1707
  %v1711 = vsel %vm733, %v1399, 0
  %1713 = vmatprep.subr.mxu0 0.0
  %1714 = vmatpush1.msra.mxu0 %v1708
  %1715 = vmatprep.subr.mxu0 0.0
  %1716 = vmatpush1.msra.mxu0 0.0
  %1717 = vmatprep.subr.mxu0 0.0
  %1718 = vmatpush1.msra.mxu0 0.0
  %1719 = vmatprep.subr.mxu0 0.0
  %1720 = vmatpush1.msra.mxu0 0.0
  %1721 = vmatprep.subr.mxu0 0.0
  %1722 = vmatpush1.msra.mxu0 0.0
  %1723 = vmatprep.subr.mxu0 0.0
  %1724 = vmatpush1.msra.mxu0 0.0
  %1725 = vmatprep.subr.mxu0 0.0
  %1726 = vmatpush1.msra.mxu0 0.0
  %1727 = vmatprep.subr.mxu0 0.0
  %1728 = vmatpush1.msra.mxu0 0.0
  %1729 = vmatprep.subr.mxu0 0.0
  %1730 = vmatpush1.msra.mxu0 0.0
  %1731 = vmatprep.subr.mxu0 0.0
  %1732 = vmatpush1.msra.mxu0 0.0
  %1733 = vmatprep.subr.mxu0 0.0
  %1734 = vmatpush1.msra.mxu0 0.0
  %1735 = vmatprep.subr.mxu0 0.0
  %1736 = vmatpush1.msra.mxu0 0.0
  %1737 = vmatprep.subr.mxu0 0.0
  %1738 = vmatpush1.msra.mxu0 0.0
  %1739 = vmatprep.subr.mxu0 0.0
  %1740 = vmatpush1.msra.mxu0 0.0
  %1741 = vmatprep.subr.mxu0 0.0
  %1742 = vmatpush1.msra.mxu0 0.0
  %1743 = vmatprep.subr.mxu0 0.0
  %1744 = vmatpush1.msra.mxu0 0.0
  %1745 = vmatprep.subr.mxu0 0.0
  %1746 = vmatpush1.msra.mxu0 0.0
  %1747 = vmatprep.subr.mxu0 0.0
  %1748 = vmatpush1.msra.mxu0 0.0
  %1749 = vmatprep.subr.mxu0 0.0
  %1750 = vmatpush1.msra.mxu0 0.0
  %1751 = vmatprep.subr.mxu0 0.0
  %1752 = vmatpush1.msra.mxu0 0.0
  %1753 = vmatprep.subr.mxu0 0.0
  %1754 = vmatpush1.msra.mxu0 0.0
  %1755 = vmatprep.subr.mxu0 0.0
  %1756 = vmatpush1.msra.mxu0 0.0
  %1757 = vmatprep.subr.mxu0 0.0
  %1758 = vmatpush1.msra.mxu0 0.0
  %1759 = vmatprep.subr.mxu0 0.0
  %1760 = vmatpush1.msra.mxu0 0.0
  %1761 = vmatprep.subr.mxu0 0.0
  %1762 = vmatpush1.msra.mxu0 0.0
  %1763 = vmatprep.subr.mxu0 0.0
  %1764 = vmatpush1.msra.mxu0 0.0
  %1765 = vmatprep.subr.mxu0 0.0
  %1766 = vmatpush1.msra.mxu0 0.0
  %1767 = vmatprep.subr.mxu0 0.0
  %1768 = vmatpush1.msra.mxu0 0.0
  %1769 = vmatprep.subr.mxu0 0.0
  %1770 = vmatpush1.msra.mxu0 0.0
  %1771 = vmatprep.subr.mxu0 0.0
  %1772 = vmatpush1.msra.mxu0 0.0
  %1773 = vmatprep.subr.mxu0 0.0
  %1774 = vmatpush1.msra.mxu0 0.0
  %1775 = vmatprep.subr.mxu0 0.0
  %1776 = vmatpush1.msra.mxu0 0.0
  %1777 = vmatprep.mubr.f32.mxu0 0.0
  %1778 = vmatmul.mubr.f32.gmra.mrb[0].mxu0 %v1711
  %v1779 = vpop.f32.mrb[0].mxu0
  %v1780 = vadd.f32 0.0, %v1779
  %v1781 = vpop.f32.mrb[0].mxu0
  %1782 = vdwg.mxu0
  %1783 = vrot.lane.b32.xlu0 %v587, 112
  %v1784 = vpop.permute.xlu0 %1783
  %v1787 = vsel %vm733, %v1400, 0
  %1789 = vmatprep.subr.mxu0 0.0
  %1790 = vmatpush1.msra.mxu0 %v1784
  %1791 = vmatprep.subr.mxu0 0.0
  %1792 = vmatpush1.msra.mxu0 0.0
  %1793 = vmatprep.subr.mxu0 0.0
  %1794 = vmatpush1.msra.mxu0 0.0
  %1795 = vmatprep.subr.mxu0 0.0
  %1796 = vmatpush1.msra.mxu0 0.0
  %1797 = vmatprep.subr.mxu0 0.0
  %1798 = vmatpush1.msra.mxu0 0.0
  %1799 = vmatprep.subr.mxu0 0.0
  %1800 = vmatpush1.msra.mxu0 0.0
  %1801 = vmatprep.subr.mxu0 0.0
  %1802 = vmatpush1.msra.mxu0 0.0
  %1803 = vmatprep.subr.mxu0 0.0
  %1804 = vmatpush1.msra.mxu0 0.0
  %1805 = vmatprep.subr.mxu0 0.0
  %1806 = vmatpush1.msra.mxu0 0.0
  %1807 = vmatprep.subr.mxu0 0.0
  %1808 = vmatpush1.msra.mxu0 0.0
  %1809 = vmatprep.subr.mxu0 0.0
  %1810 = vmatpush1.msra.mxu0 0.0
  %1811 = vmatprep.subr.mxu0 0.0
  %1812 = vmatpush1.msra.mxu0 0.0
  %1813 = vmatprep.subr.mxu0 0.0
  %1814 = vmatpush1.msra.mxu0 0.0
  %1815 = vmatprep.subr.mxu0 0.0
  %1816 = vmatpush1.msra.mxu0 0.0
  %1817 = vmatprep.subr.mxu0 0.0
  %1818 = vmatpush1.msra.mxu0 0.0
  %1819 = vmatprep.subr.mxu0 0.0
  %1820 = vmatpush1.msra.mxu0 0.0
  %1821 = vmatprep.subr.mxu0 0.0
  %1822 = vmatpush1.msra.mxu0 0.0
  %1823 = vmatprep.subr.mxu0 0.0
  %1824 = vmatpush1.msra.mxu0 0.0
  %1825 = vmatprep.subr.mxu0 0.0
  %1826 = vmatpush1.msra.mxu0 0.0
  %1827 = vmatprep.subr.mxu0 0.0
  %1828 = vmatpush1.msra.mxu0 0.0
  %1829 = vmatprep.subr.mxu0 0.0
  %1830 = vmatpush1.msra.mxu0 0.0
  %1831 = vmatprep.subr.mxu0 0.0
  %1832 = vmatpush1.msra.mxu0 0.0
  %1833 = vmatprep.subr.mxu0 0.0
  %1834 = vmatpush1.msra.mxu0 0.0
  %1835 = vmatprep.subr.mxu0 0.0
  %1836 = vmatpush1.msra.mxu0 0.0
  %1837 = vmatprep.subr.mxu0 0.0
  %1838 = vmatpush1.msra.mxu0 0.0
  %1839 = vmatprep.subr.mxu0 0.0
  %1840 = vmatpush1.msra.mxu0 0.0
  %1841 = vmatprep.subr.mxu0 0.0
  %1842 = vmatpush1.msra.mxu0 0.0
  %1843 = vmatprep.subr.mxu0 0.0
  %1844 = vmatpush1.msra.mxu0 0.0
  %1845 = vmatprep.subr.mxu0 0.0
  %1846 = vmatpush1.msra.mxu0 0.0
  %1847 = vmatprep.subr.mxu0 0.0
  %1848 = vmatpush1.msra.mxu0 0.0
  %1849 = vmatprep.subr.mxu0 0.0
  %1850 = vmatpush1.msra.mxu0 0.0
  %1851 = vmatprep.subr.mxu0 0.0
  %1852 = vmatpush1.msra.mxu0 0.0
  %1853 = vmatprep.mubr.f32.mxu0 0.0
  %1854 = vmatmul.mubr.f32.gmra.mrb[0].mxu0 %v1787
  %v1855 = vpop.f32.mrb[0].mxu0
  %v1856 = vadd.f32 0.0, %v1855
  %v1857 = vpop.f32.mrb[0].mxu0
  %1858 = vdwg.mxu0
  %1859 = vrot.lane.b32.xlu0 %v657, 112
  %v1860 = vpop.permute.xlu0 %1859
  %v1863 = vsel %vm733, %v1401, 0
  %1865 = vmatprep.subr.mxu0 0.0
  %1866 = vmatpush1.msra.mxu0 %v1860
  %1867 = vmatprep.subr.mxu0 0.0
  %1868 = vmatpush1.msra.mxu0 0.0
  %1869 = vmatprep.subr.mxu0 0.0
  %1870 = vmatpush1.msra.mxu0 0.0
  %1871 = vmatprep.subr.mxu0 0.0
  %1872 = vmatpush1.msra.mxu0 0.0
  %1873 = vmatprep.subr.mxu0 0.0
  %1874 = vmatpush1.msra.mxu0 0.0
  %1875 = vmatprep.subr.mxu0 0.0
  %1876 = vmatpush1.msra.mxu0 0.0
  %1877 = vmatprep.subr.mxu0 0.0
  %1878 = vmatpush1.msra.mxu0 0.0
  %1879 = vmatprep.subr.mxu0 0.0
  %1880 = vmatpush1.msra.mxu0 0.0
  %1881 = vmatprep.subr.mxu0 0.0
  %1882 = vmatpush1.msra.mxu0 0.0
  %1883 = vmatprep.subr.mxu0 0.0
  %1884 = vmatpush1.msra.mxu0 0.0
  %1885 = vmatprep.subr.mxu0 0.0
  %1886 = vmatpush1.msra.mxu0 0.0
  %1887 = vmatprep.subr.mxu0 0.0
  %1888 = vmatpush1.msra.mxu0 0.0
  %1889 = vmatprep.subr.mxu0 0.0
  %1890 = vmatpush1.msra.mxu0 0.0
  %1891 = vmatprep.subr.mxu0 0.0
  %1892 = vmatpush1.msra.mxu0 0.0
  %1893 = vmatprep.subr.mxu0 0.0
  %1894 = vmatpush1.msra.mxu0 0.0
  %1895 = vmatprep.subr.mxu0 0.0
  %1896 = vmatpush1.msra.mxu0 0.0
  %1897 = vmatprep.subr.mxu0 0.0
  %1898 = vmatpush1.msra.mxu0 0.0
  %1899 = vmatprep.subr.mxu0 0.0
  %1900 = vmatpush1.msra.mxu0 0.0
  %1901 = vmatprep.subr.mxu0 0.0
  %1902 = vmatpush1.msra.mxu0 0.0
  %1903 = vmatprep.subr.mxu0 0.0
  %1904 = vmatpush1.msra.mxu0 0.0
  %1905 = vmatprep.subr.mxu0 0.0
  %1906 = vmatpush1.msra.mxu0 0.0
  %1907 = vmatprep.subr.mxu0 0.0
  %1908 = vmatpush1.msra.mxu0 0.0
  %1909 = vmatprep.subr.mxu0 0.0
  %1910 = vmatpush1.msra.mxu0 0.0
  %1911 = vmatprep.subr.mxu0 0.0
  %1912 = vmatpush1.msra.mxu0 0.0
  %1913 = vmatprep.subr.mxu0 0.0
  %1914 = vmatpush1.msra.mxu0 0.0
  %1915 = vmatprep.subr.mxu0 0.0
  %1916 = vmatpush1.msra.mxu0 0.0
  %1917 = vmatprep.subr.mxu0 0.0
  %1918 = vmatpush1.msra.mxu0 0.0
  %1919 = vmatprep.subr.mxu0 0.0
  %1920 = vmatpush1.msra.mxu0 0.0
  %1921 = vmatprep.subr.mxu0 0.0
  %1922 = vmatpush1.msra.mxu0 0.0
  %1923 = vmatprep.subr.mxu0 0.0
  %1924 = vmatpush1.msra.mxu0 0.0
  %1925 = vmatprep.subr.mxu0 0.0
  %1926 = vmatpush1.msra.mxu0 0.0
  %1927 = vmatprep.subr.mxu0 0.0
  %1928 = vmatpush1.msra.mxu0 0.0
  %1929 = vmatprep.mubr.f32.mxu0 0.0
  %1930 = vmatmul.mubr.f32.gmra.mrb[0].mxu0 %v1863
  %v1931 = vpop.f32.mrb[0].mxu0
  %v1932 = vadd.f32 0.0, %v1931
  %v1933 = vpop.f32.mrb[0].mxu0
  %1934 = vdwg.mxu0
  %1935 = vrot.lane.b32.xlu0 %v727, 112
  %v1936 = vpop.permute.xlu0 %1935
  %v1939 = vsel %vm733, %v1402, 0
  %1941 = vmatprep.subr.mxu0 0.0
  %1942 = vmatpush1.msra.mxu0 %v1936
  %1943 = vmatprep.subr.mxu0 0.0
  %1944 = vmatpush1.msra.mxu0 0.0
  %1945 = vmatprep.subr.mxu0 0.0
  %1946 = vmatpush1.msra.mxu0 0.0
  %1947 = vmatprep.subr.mxu0 0.0
  %1948 = vmatpush1.msra.mxu0 0.0
  %1949 = vmatprep.subr.mxu0 0.0
  %1950 = vmatpush1.msra.mxu0 0.0
  %1951 = vmatprep.subr.mxu0 0.0
  %1952 = vmatpush1.msra.mxu0 0.0
  %1953 = vmatprep.subr.mxu0 0.0
  %1954 = vmatpush1.msra.mxu0 0.0
  %1955 = vmatprep.subr.mxu0 0.0
  %1956 = vmatpush1.msra.mxu0 0.0
  %1957 = vmatprep.subr.mxu0 0.0
  %1958 = vmatpush1.msra.mxu0 0.0
  %1959 = vmatprep.subr.mxu0 0.0
  %1960 = vmatpush1.msra.mxu0 0.0
  %1961 = vmatprep.subr.mxu0 0.0
  %1962 = vmatpush1.msra.mxu0 0.0
  %1963 = vmatprep.subr.mxu0 0.0
  %1964 = vmatpush1.msra.mxu0 0.0
  %1965 = vmatprep.subr.mxu0 0.0
  %1966 = vmatpush1.msra.mxu0 0.0
  %1967 = vmatprep.subr.mxu0 0.0
  %1968 = vmatpush1.msra.mxu0 0.0
  %1969 = vmatprep.subr.mxu0 0.0
  %1970 = vmatpush1.msra.mxu0 0.0
  %1971 = vmatprep.subr.mxu0 0.0
  %1972 = vmatpush1.msra.mxu0 0.0
  %1973 = vmatprep.subr.mxu0 0.0
  %1974 = vmatpush1.msra.mxu0 0.0
  %1975 = vmatprep.subr.mxu0 0.0
  %1976 = vmatpush1.msra.mxu0 0.0
  %1977 = vmatprep.subr.mxu0 0.0
  %1978 = vmatpush1.msra.mxu0 0.0
  %1979 = vmatprep.subr.mxu0 0.0
  %1980 = vmatpush1.msra.mxu0 0.0
  %1981 = vmatprep.subr.mxu0 0.0
  %1982 = vmatpush1.msra.mxu0 0.0
  %1983 = vmatprep.subr.mxu0 0.0
  %1984 = vmatpush1.msra.mxu0 0.0
  %1985 = vmatprep.subr.mxu0 0.0
  %1986 = vmatpush1.msra.mxu0 0.0
  %1987 = vmatprep.subr.mxu0 0.0
  %1988 = vmatpush1.msra.mxu0 0.0
  %1989 = vmatprep.subr.mxu0 0.0
  %1990 = vmatpush1.msra.mxu0 0.0
  %1991 = vmatprep.subr.mxu0 0.0
  %1992 = vmatpush1.msra.mxu0 0.0
  %1993 = vmatprep.subr.mxu0 0.0
  %1994 = vmatpush1.msra.mxu0 0.0
  %1995 = vmatprep.subr.mxu0 0.0
  %1996 = vmatpush1.msra.mxu0 0.0
  %1997 = vmatprep.subr.mxu0 0.0
  %1998 = vmatpush1.msra.mxu0 0.0
  %1999 = vmatprep.subr.mxu0 0.0
  %2000 = vmatpush1.msra.mxu0 0.0
  %2001 = vmatprep.subr.mxu0 0.0
  %2002 = vmatpush1.msra.mxu0 0.0
  %2003 = vmatprep.subr.mxu0 0.0
  %2004 = vmatpush1.msra.mxu0 0.0
  %2005 = vmatprep.mubr.f32.mxu0 0.0
  %2006 = vmatmul.mubr.f32.gmra.mrb[0].mxu0 %v1939
  %v2007 = vpop.f32.mrb[0].mxu0
  %v2008 = vadd.f32 0.0, %v2007
  %v2009 = vpop.f32.mrb[0].mxu0
  %2010 = vdwg.mxu0
  %v2011 = vsel %vm733, %v1476, 0.0
  %v2012 = vrot.slane %v2011, 4
  %v2013 = vadd.f32 %v2011, %v2012
  %v2014 = vrot.slane %v2013, 2
  %v2015 = vadd.f32 %v2013, %v2014
  %v2016 = vrot.slane %v2015, 1
  %v2017 = vadd.f32 %v2015, %v2016
  %v2018 = vsel %vm733, %v1552, 0.0
  %v2019 = vrot.slane %v2018, 4
  %v2020 = vadd.f32 %v2018, %v2019
  %v2021 = vrot.slane %v2020, 2
  %v2022 = vadd.f32 %v2020, %v2021
  %v2023 = vrot.slane %v2022, 1
  %v2024 = vadd.f32 %v2022, %v2023
  %v2025 = vsel %vm733, %v1628, 0.0
  %v2026 = vrot.slane %v2025, 4
  %v2027 = vadd.f32 %v2025, %v2026
  %v2028 = vrot.slane %v2027, 2
  %v2029 = vadd.f32 %v2027, %v2028
  %v2030 = vrot.slane %v2029, 1
  %v2031 = vadd.f32 %v2029, %v2030
  %v2032 = vsel %vm733, %v1704, 0.0
  %v2033 = vrot.slane %v2032, 4
  %v2034 = vadd.f32 %v2032, %v2033
  %v2035 = vrot.slane %v2034, 2
  %v2036 = vadd.f32 %v2034, %v2035
  %v2037 = vrot.slane %v2036, 1
  %v2038 = vadd.f32 %v2036, %v2037
  %v2039 = vsel %vm733, %v1780, 0.0
  %v2040 = vrot.slane %v2039, 4
  %v2041 = vadd.f32 %v2039, %v2040
  %v2042 = vrot.slane %v2041, 2
  %v2043 = vadd.f32 %v2041, %v2042
  %v2044 = vrot.slane %v2043, 1
  %v2045 = vadd.f32 %v2043, %v2044
  %v2046 = vsel %vm733, %v1856, 0.0
  %v2047 = vrot.slane %v2046, 4
  %v2048 = vadd.f32 %v2046, %v2047
  %v2049 = vrot.slane %v2048, 2
  %v2050 = vadd.f32 %v2048, %v2049
  %v2051 = vrot.slane %v2050, 1
  %v2052 = vadd.f32 %v2050, %v2051
  %v2053 = vsel %vm733, %v1932, 0.0
  %v2054 = vrot.slane %v2053, 4
  %v2055 = vadd.f32 %v2053, %v2054
  %v2056 = vrot.slane %v2055, 2
  %v2057 = vadd.f32 %v2055, %v2056
  %v2058 = vrot.slane %v2057, 1
  %v2059 = vadd.f32 %v2057, %v2058
  %v2060 = vsel %vm733, %v2008, 0.0
  %v2061 = vrot.slane %v2060, 4
  %v2062 = vadd.f32 %v2060, %v2061
  %v2063 = vrot.slane %v2062, 2
  %v2064 = vadd.f32 %v2062, %v2063
  %v2065 = vrot.slane %v2064, 1
  %v2066 = vadd.f32 %v2064, %v2065
  %v2067 = vld [vmem:[%s3] sm:$0xff]
  %v2069 = vrot.slane %v2067, 1
  %v2070 = vrot.slane %v2067, 2
  %v2071 = vrot.slane %v2067, 3
  %v2072 = vrot.slane %v2067, 4
  %v2073 = vrot.slane %v2067, 5
  %v2074 = vrot.slane %v2067, 6
  %v2075 = vrot.slane %v2067, 7
  %v2084 = vmul.f32 %v2017, %v2067
  %v2085 = vmul.f32 %v2024, %v2069
  %v2086 = vmul.f32 %v2031, %v2070
  %v2087 = vmul.f32 %v2038, %v2071
  %v2088 = vmul.f32 %v2045, %v2072
  %v2089 = vmul.f32 %v2052, %v2073
  %v2090 = vmul.f32 %v2059, %v2074
  %v2091 = vmul.f32 %v2066, %v2075
  %v2092 = vld [vmem:[%s4] sm:$0x3]
  %v2101 = vrot.slane %v2085, 7
  %vm2102 = vcmask 1041409
  %v2103 = vsel %vm2102, %v2101, %v2084
  %v2104 = vrot.slane %v2086, 6
  %vm2105 = vcmask 1042434
  %v2106 = vsel %vm2105, %v2104, %v2103
  %v2107 = vrot.slane %v2087, 5
  %vm2108 = vcmask 1043459
  %v2109 = vsel %vm2108, %v2107, %v2106
  %v2110 = vrot.slane %v2088, 4
  %vm2111 = vcmask 1044484
  %v2112 = vsel %vm2111, %v2110, %v2109
  %v2113 = vrot.slane %v2089, 3
  %vm2114 = vcmask 1045509
  %v2115 = vsel %vm2114, %v2113, %v2112
  %v2116 = vrot.slane %v2090, 2
  %vm2117 = vcmask 1046534
  %v2118 = vsel %vm2117, %v2116, %v2115
  %v2119 = vrot.slane %v2091, 1
  %vm2120 = vcmask 1047559
  %v2121 = vsel %vm2120, %v2119, %v2118
  %v2124 = vsel %vm733, %v2092, 0
  %2126 = vmatprep.subr.mxu0 0.0
  %2127 = vmatpush1.msra.mxu0 %v2121
  %2128 = vmatprep.subr.mxu0 0.0
  %2129 = vmatpush1.msra.mxu0 0.0
  %2130 = vmatprep.subr.mxu0 0.0
  %2131 = vmatpush1.msra.mxu0 0.0
  %2132 = vmatprep.subr.mxu0 0.0
  %2133 = vmatpush1.msra.mxu0 0.0
  %2134 = vmatprep.subr.mxu0 0.0
  %2135 = vmatpush1.msra.mxu0 0.0
  %2136 = vmatprep.subr.mxu0 0.0
  %2137 = vmatpush1.msra.mxu0 0.0
  %2138 = vmatprep.subr.mxu0 0.0
  %2139 = vmatpush1.msra.mxu0 0.0
  %2140 = vmatprep.subr.mxu0 0.0
  %2141 = vmatpush1.msra.mxu0 0.0
  %2142 = vmatprep.subr.mxu0 0.0
  %2143 = vmatpush1.msra.mxu0 0.0
  %2144 = vmatprep.subr.mxu0 0.0
  %2145 = vmatpush1.msra.mxu0 0.0
  %2146 = vmatprep.subr.mxu0 0.0
  %2147 = vmatpush1.msra.mxu0 0.0
  %2148 = vmatprep.subr.mxu0 0.0
  %2149 = vmatpush1.msra.mxu0 0.0
  %2150 = vmatprep.subr.mxu0 0.0
  %2151 = vmatpush1.msra.mxu0 0.0
  %2152 = vmatprep.subr.mxu0 0.0
  %2153 = vmatpush1.msra.mxu0 0.0
  %2154 = vmatprep.subr.mxu0 0.0
  %2155 = vmatpush1.msra.mxu0 0.0
  %2156 = vmatprep.subr.mxu0 0.0
  %2157 = vmatpush1.msra.mxu0 0.0
  %2158 = vmatprep.subr.mxu0 0.0
  %2159 = vmatpush1.msra.mxu0 0.0
  %2160 = vmatprep.subr.mxu0 0.0
  %2161 = vmatpush1.msra.mxu0 0.0
  %2162 = vmatprep.subr.mxu0 0.0
  %2163 = vmatpush1.msra.mxu0 0.0
  %2164 = vmatprep.subr.mxu0 0.0
  %2165 = vmatpush1.msra.mxu0 0.0
  %2166 = vmatprep.subr.mxu0 0.0
  %2167 = vmatpush1.msra.mxu0 0.0
  %2168 = vmatprep.subr.mxu0 0.0
  %2169 = vmatpush1.msra.mxu0 0.0
  %2170 = vmatprep.subr.mxu0 0.0
  %2171 = vmatpush1.msra.mxu0 0.0
  %2172 = vmatprep.subr.mxu0 0.0
  %2173 = vmatpush1.msra.mxu0 0.0
  %2174 = vmatprep.subr.mxu0 0.0
  %2175 = vmatpush1.msra.mxu0 0.0
  %2176 = vmatprep.subr.mxu0 0.0
  %2177 = vmatpush1.msra.mxu0 0.0
  %2178 = vmatprep.subr.mxu0 0.0
  %2179 = vmatpush1.msra.mxu0 0.0
  %2180 = vmatprep.subr.mxu0 0.0
  %2181 = vmatpush1.msra.mxu0 0.0
  %2182 = vmatprep.subr.mxu0 0.0
  %2183 = vmatpush1.msra.mxu0 0.0
  %2184 = vmatprep.subr.mxu0 0.0
  %2185 = vmatpush1.msra.mxu0 0.0
  %2186 = vmatprep.subr.mxu0 0.0
  %2187 = vmatpush1.msra.mxu0 0.0
  %2188 = vmatprep.subr.mxu0 0.0
  %2189 = vmatpush1.msra.mxu0 0.0
  %2190 = vmatprep.mubr.f32.mxu0 0.0
  %2191 = vmatmul.mubr.f32.gmra.mrb[0].mxu0 %v2124
  %v2192 = vpop.f32.mrb[0].mxu0
  %v2193 = vadd.f32 0.0, %v2192
  %v2194 = vpop.f32.mrb[0].mxu0
  %2195 = vdwg.mxu0
  %vm2196 = vcmask 58368
  %v2197 = vsel %vm2196, %v2193, 0.0
  %2198 = vadd.xlane.f32.xlu0 %v2197
  %v2199 = vpop.xlane.xlu0 %2198
  %s2200 = sld [smem:[#allocation2]]
  %v2201 = vstv %s2200
  %v2202 = vadd.f32 %v2199, %v2201
  %v2203 = vxor.u32 %v2202, 2147483648
  %v2204 = vmul.f32 %v2203, 1.442695
  %v2205 = vpow.pop %v2204
  %v2206 = vadd.f32 %v2205, 1.0
  %v2207 = vrcp.pop %v2206
  %v2208 = vmul.f32 1.0, %v2207
  %vm2209 = vcmask 1024
  %2210 = vst.msk [vmem:[%s6] sm:$0x3] %vm2209, %v2208
  // Predicated region
  $region26: #{tpu_custom_call.1} parent=0 // pred_check
    _
  $region27: #{tpu_custom_call.1} parent=0 // pred_check_branch
    %2212 = sbr.rel (0) target = $region29
  $region28: #{tpu_custom_call.1} parent=0 // pred_region
    _
  $region29: #{tpu_custom_call.1} parent=0 // pred_fallthru
    _
  // Predicated region
  $region30: #{tpu_custom_call.1} parent=0 // pred_check
    _
  $region31: #{tpu_custom_call.1} parent=0 // pred_check_branch
    %2214 = sbr.rel (0) target = $region33
  $region32: #{tpu_custom_call.1} parent=0 // pred_region
    _
  $region33: #{tpu_custom_call.1} parent=0 // pred_fallthru
    _

</llo_original>
